<compile_context>
chip_gen: v6e
topology: v6e:2x2x1
jax: 0.10.0
libtpu: 0.0.40
codegen_flags: <defaults>
</compile_context>

<pallas_src>
import jax
import jax.numpy as jnp
import numpy as np
from jax import lax
from jax.experimental import pallas as pl
from jax.experimental.pallas import tpu as pltpu

# ---------------- model hyper-parameters (small, synthetic) ------------------
INPUT_FEATURES = 8
GNN_HIDDEN = 32
NUM_LAYERS = 2
SORTPOOL_K = 12
NUM_CLASSES = 3
CONV_HIDDEN = (16, 32)
KERNEL_SIZE = 5
MLP_HIDDEN = 128
NUM_GRAPHS = 2

TOTAL_LATENT = GNN_HIDDEN * NUM_LAYERS + 1              # 65
L_POOL = (SORTPOOL_K - 2) // 2 + 1                      # 6  (MaxPool1d(2,2))
P2 = L_POOL - KERNEL_SIZE + 1                           # 2  (conv2 output length)
DENSE_DIM = P2 * CONV_HIDDEN[1]                         # 64
OUT_PAD = 128                                           # lane-dense logits slab
BL = NUM_GRAPHS * L_POOL                                # 12


def _elu(x):
    return jnp.where(x > 0, x, jnp.exp(x) - 1.0)


# ------------------------- fused forward kernel ------------------------------
def drgnet_kernel(adj_ref, x_ref, brow_ref, bcol_ref,
                  wr1_ref, wo1_ref, gb1_ref,
                  wr2_ref, wo2_ref, gb2_ref,
                  wr3_ref, wo3_ref, gb3_ref,
                  w1a_ref, w1b_ref, w1c_ref, cb1_ref,
                  w2f_ref, cb2_ref,
                  w3f_ref, mb3_ref,
                  w4p_ref, mb4_ref,
                  o_ref):
    f32 = jnp.float32
    adj = adj_ref[...]
    n = adj.shape[0]

    # ---- GraphConv stack (3 layers), everything resident in VMEM ----
    def gconv(h, wr_t, wo_t, b):
        agg = jnp.dot(adj, h, preferred_element_type=f32)
        out = (jnp.dot(agg, wr_t, preferred_element_type=f32)
               + jnp.dot(h, wo_t, preferred_element_type=f32) + b)
        return _elu(out)

    h1 = gconv(x_ref[...], wr1_ref[...], wo1_ref[...], gb1_ref[...])   # [N, 32]
    h2 = gconv(h1, wr2_ref[...], wo2_ref[...], gb2_ref[...])           # [N, 32]
    h3 = gconv(h2, wr3_ref[...], wo3_ref[...], gb3_ref[...])           # [N, 1]

    # conv1 folded into a per-node projection of x_cat = [h1 | h2 | h3]
    h_proj = (jnp.dot(h1, w1a_ref[...], preferred_element_type=f32)
              + jnp.dot(h2, w1b_ref[...], preferred_element_type=f32)
              + h3 * w1c_ref[...])                                      # [N, C1]

    # ---- sort-pool: within-graph descending rank of each node (key = h3) ----
    # key_j along rows (broadcast of [N,1]); key_i along columns via an
    # outer-product matmul (avoids an in-kernel transpose).
    key_col = h3                                                        # [N,1]
    key_row = lax.dot_general(jnp.ones((n, 1), f32), h3,
                              (((1,), (1,)), ((), ())),
                              preferred_element_type=f32)               # [N,N]
    idx_j = lax.broadcasted_iota(jnp.int32, (n, n), 0)
    idx_i = lax.broadcasted_iota(jnp.int32, (n, n), 1)
    brow = brow_ref[...]                                                # [1,N] int32
    bcol = bcol_ref[...]                                                # [N,1] int32
    same_graph = (bcol == brow)                                         # [N,N]
    beat = jnp.logical_or(key_col > key_row,
                          jnp.logical_and(key_col == key_row, idx_j < idx_i))
    beats = jnp.where(jnp.logical_and(same_graph, beat), 1.0, 0.0)      # [N,N]
    rank_own = jnp.sum(beats, axis=0, keepdims=True)                    # [1,N]

    # ---- one-hot selection of sort positions 2l / 2l+1 for ALL graphs ----
    iota_l2 = lax.broadcasted_iota(jnp.int32, (L_POOL, n), 0).astype(f32) * 2.0
    pos2 = jnp.concatenate([iota_l2] * NUM_GRAPHS, axis=0)              # [BL,N]
    gid = jnp.concatenate(
        [jnp.full((L_POOL, n), g, jnp.int32) for g in range(NUM_GRAPHS)],
        axis=0)                                                         # [BL,N]
    in_graph = (gid == brow)                                            # [BL,N]
    sel_even = jnp.where(jnp.logical_and(pos2 == rank_own, in_graph), 1.0, 0.0)
    sel_odd = jnp.where(jnp.logical_and(pos2 + 1.0 == rank_own, in_graph),
                        1.0, 0.0)

    # conv1 + ELU at even/odd sort positions, MaxPool1d(2,2) fused as max.
    # Zero selection rows (padding positions) reproduce sort-pool zero-padding.
    cb1 = cb1_ref[...]
    e = _elu(jnp.dot(sel_even, h_proj, preferred_element_type=f32) + cb1)
    o = _elu(jnp.dot(sel_odd, h_proj, preferred_element_type=f32) + cb1)
    m = jnp.maximum(e, o)                                               # [BL, C1]

    # conv2 as ONE batched im2col matmul: [B*P2, K*C1] @ [K*C1, C2]
    im2col = jnp.concatenate(
        [jnp.concatenate([m[g * L_POOL + kk: g * L_POOL + kk + P2, :]
                          for kk in range(KERNEL_SIZE)], axis=1)
         for g in range(NUM_GRAPHS)], axis=0)                           # [B*P2, K*C1]
    c2 = _elu(jnp.dot(im2col, w2f_ref[...], preferred_element_type=f32)
              + cb2_ref[...])                                           # [B*P2, C2]

    # MLP: per-graph flatten in (position, channel) order (weights pre-permuted
    # on the host to match torch's channel-major .view(B, -1)).
    flat = jnp.concatenate(
        [jnp.concatenate([c2[g * P2 + p: g * P2 + p + 1, :]
                          for p in range(P2)], axis=1)
         for g in range(NUM_GRAPHS)], axis=0)                           # [B, P2*C2]
    d1 = _elu(jnp.dot(flat, w3f_ref[...], preferred_element_type=f32)
              + mb3_ref[...])                                           # [B, 128]
    o_ref[...] = (jnp.dot(d1, w4p_ref[...], preferred_element_type=f32)
                  + mb4_ref[...])                                       # [B, 128]


def drgnet_forward_pallas(x, adj, batch, params):
    n = x.shape[0]
    C1, C2 = CONV_HIDDEN
    K = KERNEL_SIZE

    g1, g2, g3 = params['gnn']

    # conv1 weight split into the three x_cat blocks (host-side, free)
    W1 = params['W1'].reshape(C1, TOTAL_LATENT)
    w1a_t = W1[:, :GNN_HIDDEN].T                                 # [32, C1]
    w1b_t = W1[:, GNN_HIDDEN:2 * GNN_HIDDEN].T                   # [32, C1]
    w1c_t = W1[:, 2 * GNN_HIDDEN:].T                             # [1, C1]
    cb1 = params['b1'].reshape(1, C1)
    # conv2 weight in im2col layout: row index = kk*C1 + ci
    w2f = jnp.transpose(params['W2'], (2, 1, 0)).reshape(K * C1, C2)
    cb2 = params['b2'].reshape(1, C2)
    # MLP W3 columns reordered from torch's (channel, position) flatten to the
    # kernel's (position, channel) flatten; then transposed for x @ W.
    w3f = (params['W3'].reshape(MLP_HIDDEN, C2, P2)
           .transpose(2, 1, 0).reshape(P2 * C2, MLP_HIDDEN))     # [P2*C2, 128]
    mb3 = params['b3'].reshape(1, MLP_HIDDEN)
    # lane-dense padded classifier (logits land in first NUM_CLASSES lanes)
    w4p = jnp.zeros((MLP_HIDDEN, OUT_PAD), jnp.float32)
    w4p = w4p.at[:, :NUM_CLASSES].set(params['W4'].T)
    mb4 = jnp.zeros((1, OUT_PAD), jnp.float32)
    mb4 = mb4.at[:, :NUM_CLASSES].set(params['b4'].reshape(1, NUM_CLASSES))

    vmem = pl.BlockSpec(memory_space=pltpu.MemorySpace.VMEM)
    out_pad = pl.pallas_call(
        drgnet_kernel,
        out_shape=jax.ShapeDtypeStruct((NUM_GRAPHS, OUT_PAD), jnp.float32),
        in_specs=[vmem] * 23,
        out_specs=vmem,
    )(adj, x,
      batch.reshape(1, n).astype(jnp.int32),
      batch.reshape(n, 1).astype(jnp.int32),
      g1['w_rel'].T, g1['w_root'].T, g1['b_rel'].reshape(1, -1),
      g2['w_rel'].T, g2['w_root'].T, g2['b_rel'].reshape(1, -1),
      g3['w_rel'].T, g3['w_root'].T, g3['b_rel'].reshape(1, -1),
      w1a_t, w1b_t, w1c_t, cb1,
      w2f, cb2, w3f, mb3, w4p, mb4)
    return out_pad[:, :NUM_CLASSES]


# ----------------------- reference (plain JAX, sort-based) --------------------
def sort_pool(x_cat, batch, num_graphs, k):
    outs = []
    for g in range(num_graphs):
        mask = batch == g
        key = jnp.where(mask, x_cat[:, -1], -jnp.inf)
        order = jnp.argsort(-key)                 # descending by last feature
        topk = order[:k]
        vals = jnp.where(mask[topk][:, None], x_cat[topk], 0.0)  # zero padding
        outs.append(vals.reshape(-1))
    return jnp.stack(outs)                        # [num_graphs, k * D]


def drgnet_forward_ref(x, adj, batch, params):
    """Plain-JAX reference mirroring the PyTorch semantics (eval mode)."""
    h = x
    xs = []
    for lp in params['gnn']:
        agg = adj @ h
        h = _elu(agg @ lp['w_rel'].T + lp['b_rel'] + h @ lp['w_root'].T)
        xs.append(h)
    x_cat = jnp.concatenate(xs, axis=1)
    pooled = sort_pool(x_cat, batch, NUM_GRAPHS, SORTPOOL_K)
    B = pooled.shape[0]
    D = TOTAL_LATENT
    C1, C2 = CONV_HIDDEN
    K = KERNEL_SIZE
    z = pooled.reshape(B, SORTPOOL_K, D)
    W1 = params['W1'].reshape(C1, D)
    c1 = _elu(jnp.einsum('bkd,cd->bck', z, W1) + params['b1'][None, :, None])
    mp = jnp.max(c1[:, :, :2 * L_POOL].reshape(B, C1, L_POOL, 2), axis=-1)
    W2 = params['W2']
    c2 = jnp.stack(
        [sum(jnp.einsum('bi,ci->bc', mp[:, :, p + kk], W2[:, :, kk])
             for kk in range(K)) for p in range(P2)],
        axis=-1) + params['b2'][None, :, None]                  # [B, C2, P2]
    c2 = _elu(c2)
    flat = c2.reshape(B, -1)                                    # torch .view(B,-1)
    d1 = _elu(flat @ params['W3'].T + params['b3'])
    return d1 @ params['W4'].T + params['b4']


# --------------------------------- params ------------------------------------
def make_params(key):
    def nrm(k, shape, scale=0.2):
        return scale * jax.random.normal(k, shape, dtype=jnp.float32)

    params = {'gnn': []}
    gnn_dims = [INPUT_FEATURES] + [GNN_HIDDEN] * NUM_LAYERS
    pairs = list(zip(gnn_dims[:-1], gnn_dims[1:])) + [(GNN_HIDDEN, 1)]
    for cin, cout in pairs:
        key, ka, kb, kc = jax.random.split(key, 4)
        params['gnn'].append(dict(
            w_rel=nrm(ka, (cout, cin)),
            b_rel=nrm(kb, (cout,), 0.1),
            w_root=nrm(kc, (cout, cin)),
        ))
    C1, C2 = CONV_HIDDEN
    key, k1, k2, k3, k4, k5, k6, k7, k8 = jax.random.split(key, 9)
    params['W1'] = nrm(k1, (C1, 1, TOTAL_LATENT))
    params['b1'] = nrm(k2, (C1,), 0.1)
    params['W2'] = nrm(k3, (C2, C1, KERNEL_SIZE))
    params['b2'] = nrm(k4, (C2,), 0.1)
    params['W3'] = nrm(k5, (MLP_HIDDEN, DENSE_DIM))
    params['b3'] = nrm(k6, (MLP_HIDDEN,), 0.1)
    params['W4'] = nrm(k7, (NUM_CLASSES, MLP_HIDDEN))
    params['b4'] = nrm(k8, (NUM_CLASSES,), 0.1)
    return params


# ----------------------------------- main -------------------------------------
if __name__ == "__main__":
    key = jax.random.PRNGKey(0)
    key, kx, ks0, kd0, ks1, kd1, kw, kp = jax.random.split(key, 8)

    n0, n1 = 11, 9                       # nodes per graph (graph 1 < sortpool_k)
    N = n0 + n1
    E0, E1 = 22, 18
    x = jax.random.normal(kx, (N, INPUT_FEATURES), dtype=jnp.float32)
    src0 = jax.random.randint(ks0, (E0,), 0, n0)
    dst0 = jax.random.randint(kd0, (E0,), 0, n0)
    src1 = jax.random.randint(ks1, (E1,), 0, n1) + n0
    dst1 = jax.random.randint(kd1, (E1,), 0, n1) + n0
    edge_index = jnp.stack([jnp.concatenate([src0, src1]),
                            jnp.concatenate([dst0, dst1])]).astype(jnp.int32)
    edge_weight = jax.random.uniform(kw, (E0 + E1,), minval=0.5, maxval=1.5,
                                     dtype=jnp.float32)
    batch = jnp.concatenate([jnp.zeros(n0, jnp.int32), jnp.ones(n1, jnp.int32)])

    # dense adjacency: A[dst, src] = edge_weight  (message: x[src]*w summed at dst)
    adj = jnp.zeros((N, N), jnp.float32).at[edge_index[1], edge_index[0]].add(
        edge_weight)

    params = make_params(kp)

    fwd = jax.jit(drgnet_forward_pallas)
    logits = fwd(x, adj, batch, params)
    logits = jax.block_until_ready(logits)

    logits_ref = drgnet_forward_ref(x, adj, batch, params)
    np.testing.assert_allclose(np.asarray(logits), np.asarray(logits_ref),
                               rtol=1e-4, atol=1e-4)
    assert logits.shape == (NUM_GRAPHS, NUM_CLASSES)
    print("KERNEL_OK")
</pallas_src>

<mosaic_0001>
module attributes {stable_mosaic.version = 11 : i64} {
  func.func @drgnet_kernel(%arg0: memref<20x20xf32, #tpu.memory_space<vmem>>, %arg1: memref<20x8xf32, #tpu.memory_space<vmem>>, %arg2: memref<1x20xi32, #tpu.memory_space<vmem>>, %arg3: memref<20x1xi32, #tpu.memory_space<vmem>>, %arg4: memref<8x32xf32, #tpu.memory_space<vmem>>, %arg5: memref<8x32xf32, #tpu.memory_space<vmem>>, %arg6: memref<1x32xf32, #tpu.memory_space<vmem>>, %arg7: memref<32x32xf32, #tpu.memory_space<vmem>>, %arg8: memref<32x32xf32, #tpu.memory_space<vmem>>, %arg9: memref<1x32xf32, #tpu.memory_space<vmem>>, %arg10: memref<32x1xf32, #tpu.memory_space<vmem>>, %arg11: memref<32x1xf32, #tpu.memory_space<vmem>>, %arg12: memref<1x1xf32, #tpu.memory_space<vmem>>, %arg13: memref<32x16xf32, #tpu.memory_space<vmem>>, %arg14: memref<32x16xf32, #tpu.memory_space<vmem>>, %arg15: memref<1x16xf32, #tpu.memory_space<vmem>>, %arg16: memref<1x16xf32, #tpu.memory_space<vmem>>, %arg17: memref<80x32xf32, #tpu.memory_space<vmem>>, %arg18: memref<1x32xf32, #tpu.memory_space<vmem>>, %arg19: memref<64x128xf32, #tpu.memory_space<vmem>>, %arg20: memref<1x128xf32, #tpu.memory_space<vmem>>, %arg21: memref<128x128xf32, #tpu.memory_space<vmem>>, %arg22: memref<1x128xf32, #tpu.memory_space<vmem>>, %arg23: memref<2x128xf32, #tpu.memory_space<vmem>>) attributes {dimension_semantics = [], scalar_prefetch = 0 : i64, scratch_operands = 0 : i64, tpu.core_type = #tpu.core_type<tc>} {
    %c0 = arith.constant 0 : index
    %c0_0 = arith.constant 0 : index
    %0 = vector.load %arg0[%c0, %c0_0] : memref<20x20xf32, #tpu.memory_space<vmem>>, vector<20x20xf32>
    %c0_1 = arith.constant 0 : index
    %c0_2 = arith.constant 0 : index
    %1 = vector.load %arg1[%c0_1, %c0_2] : memref<20x8xf32, #tpu.memory_space<vmem>>, vector<20x8xf32>
    %c0_3 = arith.constant 0 : index
    %c0_4 = arith.constant 0 : index
    %2 = vector.load %arg4[%c0_3, %c0_4] : memref<8x32xf32, #tpu.memory_space<vmem>>, vector<8x32xf32>
    %c0_5 = arith.constant 0 : index
    %c0_6 = arith.constant 0 : index
    %3 = vector.load %arg5[%c0_5, %c0_6] : memref<8x32xf32, #tpu.memory_space<vmem>>, vector<8x32xf32>
    %c0_7 = arith.constant 0 : index
    %c0_8 = arith.constant 0 : index
    %4 = vector.load %arg6[%c0_7, %c0_8] : memref<1x32xf32, #tpu.memory_space<vmem>>, vector<1x32xf32>
    %cst = arith.constant dense<0.000000e+00> : vector<20x8xf32>
    %5 = tpu.matmul %0, %1, %cst {dimension_numbers = #tpu.dot_dimension_numbers<[1], [0], [0], [1], [0, 0, 1, 1], [], []>} : vector<20x20xf32>, vector<20x8xf32>, vector<20x8xf32> -> vector<20x8xf32>
    %cst_9 = arith.constant dense<0.000000e+00> : vector<20x32xf32>
    %6 = tpu.matmul %5, %2, %cst_9 {dimension_numbers = #tpu.dot_dimension_numbers<[1], [0], [0], [1], [0, 0, 1, 1], [], []>} : vector<20x8xf32>, vector<8x32xf32>, vector<20x32xf32> -> vector<20x32xf32>
    %cst_10 = arith.constant dense<0.000000e+00> : vector<20x32xf32>
    %7 = tpu.matmul %1, %3, %cst_10 {dimension_numbers = #tpu.dot_dimension_numbers<[1], [0], [0], [1], [0, 0, 1, 1], [], []>} : vector<20x8xf32>, vector<8x32xf32>, vector<20x32xf32> -> vector<20x32xf32>
    %8 = arith.addf %6, %7 : vector<20x32xf32>
    %9 = vector.broadcast %4 : vector<1x32xf32> to vector<20x32xf32>
    %10 = arith.addf %8, %9 : vector<20x32xf32>
    %cst_11 = arith.constant 0.000000e+00 : f32
    %11 = vector.broadcast %cst_11 : f32 to vector<20x32xf32>
    %12 = arith.cmpf ogt, %10, %11 : vector<20x32xf32>
    %13 = math.exp %10 : vector<20x32xf32>
    %cst_12 = arith.constant 1.000000e+00 : f32
    %14 = vector.broadcast %cst_12 : f32 to vector<20x32xf32>
    %15 = arith.subf %13, %14 : vector<20x32xf32>
    %16 = arith.select %12, %10, %15 : vector<20x32xi1>, vector<20x32xf32>
    %c0_13 = arith.constant 0 : index
    %c0_14 = arith.constant 0 : index
    %17 = vector.load %arg7[%c0_13, %c0_14] : memref<32x32xf32, #tpu.memory_space<vmem>>, vector<32x32xf32>
    %c0_15 = arith.constant 0 : index
    %c0_16 = arith.constant 0 : index
    %18 = vector.load %arg8[%c0_15, %c0_16] : memref<32x32xf32, #tpu.memory_space<vmem>>, vector<32x32xf32>
    %c0_17 = arith.constant 0 : index
    %c0_18 = arith.constant 0 : index
    %19 = vector.load %arg9[%c0_17, %c0_18] : memref<1x32xf32, #tpu.memory_space<vmem>>, vector<1x32xf32>
    %cst_19 = arith.constant dense<0.000000e+00> : vector<20x32xf32>
    %20 = tpu.matmul %0, %16, %cst_19 {dimension_numbers = #tpu.dot_dimension_numbers<[1], [0], [0], [1], [0, 0, 1, 1], [], []>} : vector<20x20xf32>, vector<20x32xf32>, vector<20x32xf32> -> vector<20x32xf32>
    %cst_20 = arith.constant dense<0.000000e+00> : vector<20x32xf32>
    %21 = tpu.matmul %20, %17, %cst_20 {dimension_numbers = #tpu.dot_dimension_numbers<[1], [0], [0], [1], [0, 0, 1, 1], [], []>} : vector<20x32xf32>, vector<32x32xf32>, vector<20x32xf32> -> vector<20x32xf32>
    %cst_21 = arith.constant dense<0.000000e+00> : vector<20x32xf32>
    %22 = tpu.matmul %16, %18, %cst_21 {dimension_numbers = #tpu.dot_dimension_numbers<[1], [0], [0], [1], [0, 0, 1, 1], [], []>} : vector<20x32xf32>, vector<32x32xf32>, vector<20x32xf32> -> vector<20x32xf32>
    %23 = arith.addf %21, %22 : vector<20x32xf32>
    %24 = vector.broadcast %19 : vector<1x32xf32> to vector<20x32xf32>
    %25 = arith.addf %23, %24 : vector<20x32xf32>
    %cst_22 = arith.constant 0.000000e+00 : f32
    %26 = vector.broadcast %cst_22 : f32 to vector<20x32xf32>
    %27 = arith.cmpf ogt, %25, %26 : vector<20x32xf32>
    %28 = math.exp %25 : vector<20x32xf32>
    %cst_23 = arith.constant 1.000000e+00 : f32
    %29 = vector.broadcast %cst_23 : f32 to vector<20x32xf32>
    %30 = arith.subf %28, %29 : vector<20x32xf32>
    %31 = arith.select %27, %25, %30 : vector<20x32xi1>, vector<20x32xf32>
    %c0_24 = arith.constant 0 : index
    %c0_25 = arith.constant 0 : index
    %32 = vector.load %arg10[%c0_24, %c0_25] : memref<32x1xf32, #tpu.memory_space<vmem>>, vector<32x1xf32>
    %c0_26 = arith.constant 0 : index
    %c0_27 = arith.constant 0 : index
    %33 = vector.load %arg11[%c0_26, %c0_27] : memref<32x1xf32, #tpu.memory_space<vmem>>, vector<32x1xf32>
    %c0_28 = arith.constant 0 : index
    %c0_29 = arith.constant 0 : index
    %34 = vector.load %arg12[%c0_28, %c0_29] : memref<1x1xf32, #tpu.memory_space<vmem>>, vector<1x1xf32>
    %cst_30 = arith.constant dense<0.000000e+00> : vector<20x32xf32>
    %35 = tpu.matmul %0, %31, %cst_30 {dimension_numbers = #tpu.dot_dimension_numbers<[1], [0], [0], [1], [0, 0, 1, 1], [], []>} : vector<20x20xf32>, vector<20x32xf32>, vector<20x32xf32> -> vector<20x32xf32>
    %cst_31 = arith.constant dense<0.000000e+00> : vector<20x1xf32>
    %36 = tpu.matmul %35, %32, %cst_31 {dimension_numbers = #tpu.dot_dimension_numbers<[1], [0], [0], [1], [0, 0, 1, 1], [], []>} : vector<20x32xf32>, vector<32x1xf32>, vector<20x1xf32> -> vector<20x1xf32>
    %cst_32 = arith.constant dense<0.000000e+00> : vector<20x1xf32>
    %37 = tpu.matmul %31, %33, %cst_32 {dimension_numbers = #tpu.dot_dimension_numbers<[1], [0], [0], [1], [0, 0, 1, 1], [], []>} : vector<20x32xf32>, vector<32x1xf32>, vector<20x1xf32> -> vector<20x1xf32>
    %38 = arith.addf %36, %37 : vector<20x1xf32>
    %39 = vector.broadcast %34 : vector<1x1xf32> to vector<20x1xf32>
    %40 = arith.addf %38, %39 : vector<20x1xf32>
    %cst_33 = arith.constant 0.000000e+00 : f32
    %41 = vector.broadcast %cst_33 : f32 to vector<20x1xf32>
    %42 = arith.cmpf ogt, %40, %41 : vector<20x1xf32>
    %43 = math.exp %40 : vector<20x1xf32>
    %cst_34 = arith.constant 1.000000e+00 : f32
    %44 = vector.broadcast %cst_34 : f32 to vector<20x1xf32>
    %45 = arith.subf %43, %44 : vector<20x1xf32>
    %46 = arith.select %42, %40, %45 : vector<20x1xi1>, vector<20x1xf32>
    %c0_35 = arith.constant 0 : index
    %c0_36 = arith.constant 0 : index
    %47 = vector.load %arg13[%c0_35, %c0_36] : memref<32x16xf32, #tpu.memory_space<vmem>>, vector<32x16xf32>
    %cst_37 = arith.constant dense<0.000000e+00> : vector<20x16xf32>
    %48 = tpu.matmul %16, %47, %cst_37 {dimension_numbers = #tpu.dot_dimension_numbers<[1], [0], [0], [1], [0, 0, 1, 1], [], []>} : vector<20x32xf32>, vector<32x16xf32>, vector<20x16xf32> -> vector<20x16xf32>
    %c0_38 = arith.constant 0 : index
    %c0_39 = arith.constant 0 : index
    %49 = vector.load %arg14[%c0_38, %c0_39] : memref<32x16xf32, #tpu.memory_space<vmem>>, vector<32x16xf32>
    %cst_40 = arith.constant dense<0.000000e+00> : vector<20x16xf32>
    %50 = tpu.matmul %31, %49, %cst_40 {dimension_numbers = #tpu.dot_dimension_numbers<[1], [0], [0], [1], [0, 0, 1, 1], [], []>} : vector<20x32xf32>, vector<32x16xf32>, vector<20x16xf32> -> vector<20x16xf32>
    %51 = arith.addf %48, %50 : vector<20x16xf32>
    %c0_41 = arith.constant 0 : index
    %c0_42 = arith.constant 0 : index
    %52 = vector.load %arg15[%c0_41, %c0_42] : memref<1x16xf32, #tpu.memory_space<vmem>>, vector<1x16xf32>
    %53 = vector.broadcast %46 : vector<20x1xf32> to vector<20x16xf32>
    %54 = vector.broadcast %52 : vector<1x16xf32> to vector<20x16xf32>
    %55 = arith.mulf %53, %54 : vector<20x16xf32>
    %56 = arith.addf %51, %55 : vector<20x16xf32>
    %cst_43 = arith.constant 1.000000e+00 : f32
    %57 = vector.broadcast %cst_43 : f32 to vector<20x1xf32>
    %cst_44 = arith.constant dense<0.000000e+00> : vector<20x20xf32>
    %58 = tpu.matmul %57, %46, %cst_44 {dimension_numbers = #tpu.dot_dimension_numbers<[1], [1], [0], [0], [0, 0, 1, 0], [], []>} : vector<20x1xf32>, vector<20x1xf32>, vector<20x20xf32> -> vector<20x20xf32>
    %59 = tpu.iota {dimensions = array<i32: 0>} : vector<20x20xi32>
    %60 = tpu.iota {dimensions = array<i32: 1>} : vector<20x20xi32>
    %c0_45 = arith.constant 0 : index
    %c0_46 = arith.constant 0 : index
    %61 = vector.load %arg2[%c0_45, %c0_46] : memref<1x20xi32, #tpu.memory_space<vmem>>, vector<1x20xi32>
    %c0_47 = arith.constant 0 : index
    %c0_48 = arith.constant 0 : index
    %62 = vector.load %arg3[%c0_47, %c0_48] : memref<20x1xi32, #tpu.memory_space<vmem>>, vector<20x1xi32>
    %63 = vector.broadcast %62 : vector<20x1xi32> to vector<20x20xi32>
    %64 = vector.broadcast %61 : vector<1x20xi32> to vector<20x20xi32>
    %65 = arith.cmpi eq, %63, %64 : vector<20x20xi32>
    %66 = vector.broadcast %46 : vector<20x1xf32> to vector<20x20xf32>
    %67 = arith.cmpf ogt, %66, %58 : vector<20x20xf32>
    %68 = vector.broadcast %46 : vector<20x1xf32> to vector<20x20xf32>
    %69 = arith.cmpf oeq, %68, %58 : vector<20x20xf32>
    %70 = arith.cmpi slt, %59, %60 : vector<20x20xi32>
    %71 = arith.andi %69, %70 : vector<20x20xi1>
    %72 = arith.ori %67, %71 : vector<20x20xi1>
    %73 = arith.andi %65, %72 : vector<20x20xi1>
    %cst_49 = arith.constant 1.000000e+00 : f32
    %cst_50 = arith.constant 0.000000e+00 : f32
    %74 = vector.broadcast %cst_49 : f32 to vector<20x20xf32>
    %75 = vector.broadcast %cst_50 : f32 to vector<20x20xf32>
    %76 = arith.select %73, %74, %75 : vector<20x20xi1>, vector<20x20xf32>
    %cst_51 = arith.constant dense<0.000000e+00> : vector<20xf32>
    %77 = vector.multi_reduction <add>, %76, %cst_51 [0] : vector<20x20xf32> to vector<20xf32>
    %78 = vector.shape_cast %77 : vector<20xf32> to vector<1x20xf32>
    %79 = tpu.iota {dimensions = array<i32: 0>} : vector<6x20xi32>
    %80 = arith.sitofp %79 : vector<6x20xi32> to vector<6x20xf32>
    %cst_52 = arith.constant 2.000000e+00 : f32
    %81 = vector.broadcast %cst_52 : f32 to vector<6x20xf32>
    %82 = arith.mulf %80, %81 : vector<6x20xf32>
    %83 = tpu.concatenate %82, %82 in 0 : vector<6x20xf32>, vector<6x20xf32> -> vector<12x20xf32>
    %c0_i32 = arith.constant 0 : i32
    %84 = vector.broadcast %c0_i32 : i32 to vector<6x20xi32>
    %c1_i32 = arith.constant 1 : i32
    %85 = vector.broadcast %c1_i32 : i32 to vector<6x20xi32>
    %86 = tpu.concatenate %84, %85 in 0 : vector<6x20xi32>, vector<6x20xi32> -> vector<12x20xi32>
    %87 = vector.broadcast %61 : vector<1x20xi32> to vector<12x20xi32>
    %88 = arith.cmpi eq, %86, %87 : vector<12x20xi32>
    %89 = vector.broadcast %78 : vector<1x20xf32> to vector<12x20xf32>
    %90 = arith.cmpf oeq, %83, %89 : vector<12x20xf32>
    %91 = arith.andi %90, %88 : vector<12x20xi1>
    %cst_53 = arith.constant 1.000000e+00 : f32
    %cst_54 = arith.constant 0.000000e+00 : f32
    %92 = vector.broadcast %cst_53 : f32 to vector<12x20xf32>
    %93 = vector.broadcast %cst_54 : f32 to vector<12x20xf32>
    %94 = arith.select %91, %92, %93 : vector<12x20xi1>, vector<12x20xf32>
    %cst_55 = arith.constant 1.000000e+00 : f32
    %95 = vector.broadcast %cst_55 : f32 to vector<12x20xf32>
    %96 = arith.addf %83, %95 : vector<12x20xf32>
    %97 = vector.broadcast %78 : vector<1x20xf32> to vector<12x20xf32>
    %98 = arith.cmpf oeq, %96, %97 : vector<12x20xf32>
    %99 = arith.andi %98, %88 : vector<12x20xi1>
    %cst_56 = arith.constant 1.000000e+00 : f32
    %cst_57 = arith.constant 0.000000e+00 : f32
    %100 = vector.broadcast %cst_56 : f32 to vector<12x20xf32>
    %101 = vector.broadcast %cst_57 : f32 to vector<12x20xf32>
    %102 = arith.select %99, %100, %101 : vector<12x20xi1>, vector<12x20xf32>
    %c0_58 = arith.constant 0 : index
    %c0_59 = arith.constant 0 : index
    %103 = vector.load %arg16[%c0_58, %c0_59] : memref<1x16xf32, #tpu.memory_space<vmem>>, vector<1x16xf32>
    %cst_60 = arith.constant dense<0.000000e+00> : vector<12x16xf32>
    %104 = tpu.matmul %94, %56, %cst_60 {dimension_numbers = #tpu.dot_dimension_numbers<[1], [0], [0], [1], [0, 0, 1, 1], [], []>} : vector<12x20xf32>, vector<20x16xf32>, vector<12x16xf32> -> vector<12x16xf32>
    %105 = vector.broadcast %103 : vector<1x16xf32> to vector<12x16xf32>
    %106 = arith.addf %104, %105 : vector<12x16xf32>
    %cst_61 = arith.constant 0.000000e+00 : f32
    %107 = vector.broadcast %cst_61 : f32 to vector<12x16xf32>
    %108 = arith.cmpf ogt, %106, %107 : vector<12x16xf32>
    %109 = math.exp %106 : vector<12x16xf32>
    %cst_62 = arith.constant 1.000000e+00 : f32
    %110 = vector.broadcast %cst_62 : f32 to vector<12x16xf32>
    %111 = arith.subf %109, %110 : vector<12x16xf32>
    %112 = arith.select %108, %106, %111 : vector<12x16xi1>, vector<12x16xf32>
    %cst_63 = arith.constant dense<0.000000e+00> : vector<12x16xf32>
    %113 = tpu.matmul %102, %56, %cst_63 {dimension_numbers = #tpu.dot_dimension_numbers<[1], [0], [0], [1], [0, 0, 1, 1], [], []>} : vector<12x20xf32>, vector<20x16xf32>, vector<12x16xf32> -> vector<12x16xf32>
    %114 = vector.broadcast %103 : vector<1x16xf32> to vector<12x16xf32>
    %115 = arith.addf %113, %114 : vector<12x16xf32>
    %cst_64 = arith.constant 0.000000e+00 : f32
    %116 = vector.broadcast %cst_64 : f32 to vector<12x16xf32>
    %117 = arith.cmpf ogt, %115, %116 : vector<12x16xf32>
    %118 = math.exp %115 : vector<12x16xf32>
    %cst_65 = arith.constant 1.000000e+00 : f32
    %119 = vector.broadcast %cst_65 : f32 to vector<12x16xf32>
    %120 = arith.subf %118, %119 : vector<12x16xf32>
    %121 = arith.select %117, %115, %120 : vector<12x16xi1>, vector<12x16xf32>
    %122 = arith.maximumf %112, %121 : vector<12x16xf32>
    %123 = vector.extract_strided_slice %122 {offsets = [0, 0], sizes = [2, 16], strides = [1, 1]} : vector<12x16xf32> to vector<2x16xf32>
    %124 = vector.extract_strided_slice %122 {offsets = [1, 0], sizes = [2, 16], strides = [1, 1]} : vector<12x16xf32> to vector<2x16xf32>
    %125 = vector.extract_strided_slice %122 {offsets = [2, 0], sizes = [2, 16], strides = [1, 1]} : vector<12x16xf32> to vector<2x16xf32>
    %126 = vector.extract_strided_slice %122 {offsets = [3, 0], sizes = [2, 16], strides = [1, 1]} : vector<12x16xf32> to vector<2x16xf32>
    %127 = vector.extract_strided_slice %122 {offsets = [4, 0], sizes = [2, 16], strides = [1, 1]} : vector<12x16xf32> to vector<2x16xf32>
    %128 = tpu.concatenate %123, %124, %125, %126, %127 in 1 : vector<2x16xf32>, vector<2x16xf32>, vector<2x16xf32>, vector<2x16xf32>, vector<2x16xf32> -> vector<2x80xf32>
    %129 = vector.extract_strided_slice %122 {offsets = [6, 0], sizes = [2, 16], strides = [1, 1]} : vector<12x16xf32> to vector<2x16xf32>
    %130 = vector.extract_strided_slice %122 {offsets = [7, 0], sizes = [2, 16], strides = [1, 1]} : vector<12x16xf32> to vector<2x16xf32>
    %131 = vector.extract_strided_slice %122 {offsets = [8, 0], sizes = [2, 16], strides = [1, 1]} : vector<12x16xf32> to vector<2x16xf32>
    %132 = vector.extract_strided_slice %122 {offsets = [9, 0], sizes = [2, 16], strides = [1, 1]} : vector<12x16xf32> to vector<2x16xf32>
    %133 = vector.extract_strided_slice %122 {offsets = [10, 0], sizes = [2, 16], strides = [1, 1]} : vector<12x16xf32> to vector<2x16xf32>
    %134 = tpu.concatenate %129, %130, %131, %132, %133 in 1 : vector<2x16xf32>, vector<2x16xf32>, vector<2x16xf32>, vector<2x16xf32>, vector<2x16xf32> -> vector<2x80xf32>
    %135 = tpu.concatenate %128, %134 in 0 : vector<2x80xf32>, vector<2x80xf32> -> vector<4x80xf32>
    %c0_66 = arith.constant 0 : index
    %c0_67 = arith.constant 0 : index
    %136 = vector.load %arg17[%c0_66, %c0_67] : memref<80x32xf32, #tpu.memory_space<vmem>>, vector<80x32xf32>
    %cst_68 = arith.constant dense<0.000000e+00> : vector<4x32xf32>
    %137 = tpu.matmul %135, %136, %cst_68 {dimension_numbers = #tpu.dot_dimension_numbers<[1], [0], [0], [1], [0, 0, 1, 1], [], []>} : vector<4x80xf32>, vector<80x32xf32>, vector<4x32xf32> -> vector<4x32xf32>
    %c0_69 = arith.constant 0 : index
    %c0_70 = arith.constant 0 : index
    %138 = vector.load %arg18[%c0_69, %c0_70] : memref<1x32xf32, #tpu.memory_space<vmem>>, vector<1x32xf32>
    %139 = vector.broadcast %138 : vector<1x32xf32> to vector<4x32xf32>
    %140 = arith.addf %137, %139 : vector<4x32xf32>
    %cst_71 = arith.constant 0.000000e+00 : f32
    %141 = vector.broadcast %cst_71 : f32 to vector<4x32xf32>
    %142 = arith.cmpf ogt, %140, %141 : vector<4x32xf32>
    %143 = math.exp %140 : vector<4x32xf32>
    %cst_72 = arith.constant 1.000000e+00 : f32
    %144 = vector.broadcast %cst_72 : f32 to vector<4x32xf32>
    %145 = arith.subf %143, %144 : vector<4x32xf32>
    %146 = arith.select %142, %140, %145 : vector<4x32xi1>, vector<4x32xf32>
    %147 = vector.extract_strided_slice %146 {offsets = [0, 0], sizes = [1, 32], strides = [1, 1]} : vector<4x32xf32> to vector<1x32xf32>
    %148 = vector.extract_strided_slice %146 {offsets = [1, 0], sizes = [1, 32], strides = [1, 1]} : vector<4x32xf32> to vector<1x32xf32>
    %149 = tpu.concatenate %147, %148 in 1 : vector<1x32xf32>, vector<1x32xf32> -> vector<1x64xf32>
    %150 = vector.extract_strided_slice %146 {offsets = [2, 0], sizes = [1, 32], strides = [1, 1]} : vector<4x32xf32> to vector<1x32xf32>
    %151 = vector.extract_strided_slice %146 {offsets = [3, 0], sizes = [1, 32], strides = [1, 1]} : vector<4x32xf32> to vector<1x32xf32>
    %152 = tpu.concatenate %150, %151 in 1 : vector<1x32xf32>, vector<1x32xf32> -> vector<1x64xf32>
    %153 = tpu.concatenate %149, %152 in 0 : vector<1x64xf32>, vector<1x64xf32> -> vector<2x64xf32>
    %c0_73 = arith.constant 0 : index
    %c0_74 = arith.constant 0 : index
    %154 = vector.load %arg19[%c0_73, %c0_74] : memref<64x128xf32, #tpu.memory_space<vmem>>, vector<64x128xf32>
    %cst_75 = arith.constant dense<0.000000e+00> : vector<2x128xf32>
    %155 = tpu.matmul %153, %154, %cst_75 {dimension_numbers = #tpu.dot_dimension_numbers<[1], [0], [0], [1], [0, 0, 1, 1], [], []>} : vector<2x64xf32>, vector<64x128xf32>, vector<2x128xf32> -> vector<2x128xf32>
    %c0_76 = arith.constant 0 : index
    %c0_77 = arith.constant 0 : index
    %156 = vector.load %arg20[%c0_76, %c0_77] : memref<1x128xf32, #tpu.memory_space<vmem>>, vector<1x128xf32>
    %157 = vector.broadcast %156 : vector<1x128xf32> to vector<2x128xf32>
    %158 = arith.addf %155, %157 : vector<2x128xf32>
    %cst_78 = arith.constant 0.000000e+00 : f32
    %159 = vector.broadcast %cst_78 : f32 to vector<2x128xf32>
    %160 = arith.cmpf ogt, %158, %159 : vector<2x128xf32>
    %161 = math.exp %158 : vector<2x128xf32>
    %cst_79 = arith.constant 1.000000e+00 : f32
    %162 = vector.broadcast %cst_79 : f32 to vector<2x128xf32>
    %163 = arith.subf %161, %162 : vector<2x128xf32>
    %164 = arith.select %160, %158, %163 : vector<2x128xi1>, vector<2x128xf32>
    %c0_80 = arith.constant 0 : index
    %c0_81 = arith.constant 0 : index
    %165 = vector.load %arg21[%c0_80, %c0_81] : memref<128x128xf32, #tpu.memory_space<vmem>>, vector<128x128xf32>
    %cst_82 = arith.constant dense<0.000000e+00> : vector<2x128xf32>
    %166 = tpu.matmul %164, %165, %cst_82 {dimension_numbers = #tpu.dot_dimension_numbers<[1], [0], [0], [1], [0, 0, 1, 1], [], []>} : vector<2x128xf32>, vector<128x128xf32>, vector<2x128xf32> -> vector<2x128xf32>
    %c0_83 = arith.constant 0 : index
    %c0_84 = arith.constant 0 : index
    %167 = vector.load %arg22[%c0_83, %c0_84] : memref<1x128xf32, #tpu.memory_space<vmem>>, vector<1x128xf32>
    %168 = vector.broadcast %167 : vector<1x128xf32> to vector<2x128xf32>
    %169 = arith.addf %166, %168 : vector<2x128xf32>
    %c0_85 = arith.constant 0 : index
    %c0_86 = arith.constant 0 : index
    %170 = vector.load %arg23[%c0_85, %c0_86] : memref<2x128xf32, #tpu.memory_space<vmem>>, vector<2x128xf32>
    tpu.vector_store %arg23[%c0_85, %c0_86], %169 {strides = array<i32>} : memref<2x128xf32, #tpu.memory_space<vmem>>, vector<2x128xf32>,
    return
  }
}

</mosaic_0001>

<llo_original>
// kernel: drgnet_forward_pallas.1
$region0: #{drgnet_forward_pallas.1}
  #allocation0 [shape = 'u32[]', space=smem, size = 0x4, offset = 0x4, fixed_abs, tag = 'smem constant byte address 0x4 - core index']
  #allocation1 [shape = 'u32[144,128]{1,0:T(1,128)}', space=vmem, size = 0x12000, scoped, tag = 'internal scratch']
  #allocation2 [shape = 'f32[1,1]{1,0:T(1,128)S(1)}', space=vmem, size = 0x200, scoped, tag = 'scoped memory for drgnet_forward_pallas.1']
  %s0 = inlined_call_operand.vmem [shape: f32[20,20], index: 0, kind: input, shape index: {}]
  %s1 = inlined_call_operand.vmem [shape: f32[20,8], index: 1, kind: input, shape index: {}]
  %s2 = inlined_call_operand.vmem [shape: s32[1,20], index: 2, kind: input, shape index: {}]
  %s3 = inlined_call_operand.vmem [shape: s32[20,1], index: 3, kind: input, shape index: {}]
  %s4 = inlined_call_operand.vmem [shape: f32[8,32], index: 4, kind: input, shape index: {}]
  %s5 = inlined_call_operand.vmem [shape: f32[8,32], index: 5, kind: input, shape index: {}]
  %s6 = inlined_call_operand.vmem [shape: f32[1,32], index: 6, kind: input, shape index: {}]
  %s7 = inlined_call_operand.vmem [shape: f32[32,32], index: 7, kind: input, shape index: {}]
  %s8 = inlined_call_operand.vmem [shape: f32[32,32], index: 8, kind: input, shape index: {}]
  %s9 = inlined_call_operand.vmem [shape: f32[1,32], index: 9, kind: input, shape index: {}]
  %s10 = inlined_call_operand.vmem [shape: f32[32,1], index: 10, kind: input, shape index: {}]
  %s11 = inlined_call_operand.vmem [shape: f32[32,1], index: 11, kind: input, shape index: {}]
  %s12 = inlined_call_operand.<no memory space> [shape: f32[1,1], index: 12, kind: input, shape index: {}]
  %s13 = inlined_call_operand.vmem [shape: f32[32,16], index: 13, kind: input, shape index: {}]
  %s14 = inlined_call_operand.vmem [shape: f32[32,16], index: 14, kind: input, shape index: {}]
  %s15 = inlined_call_operand.vmem [shape: f32[1,16], index: 15, kind: input, shape index: {}]
  %s16 = inlined_call_operand.vmem [shape: f32[1,16], index: 16, kind: input, shape index: {}]
  %s17 = inlined_call_operand.vmem [shape: f32[80,32], index: 17, kind: input, shape index: {}]
  %s18 = inlined_call_operand.vmem [shape: f32[1,32], index: 18, kind: input, shape index: {}]
  %s19 = inlined_call_operand.vmem [shape: f32[64,128], index: 19, kind: input, shape index: {}]
  %s20 = inlined_call_operand.vmem [shape: f32[1,128], index: 20, kind: input, shape index: {}]
  %s21 = inlined_call_operand.vmem [shape: f32[128,128], index: 21, kind: input, shape index: {}]
  %s22 = inlined_call_operand.vmem [shape: f32[1,128], index: 22, kind: input, shape index: {}]
  %s23 = inlined_call_operand.hbm [shape: f32[2,128], index: 23, kind: output, shape index: {}]
  %s24 = sld [smem:[#allocation0]]
  $region102: #{drgnet_forward_pallas.1} parent=0
    _
  %s26 = ssub.s32 1, %s24
  %s27 = scalar_select 0, %s26, %s24
  %v28 = vstv %s12
  %29 = vst [vmem:[#allocation2] sm:$0x1] %v28
  $region1: #{drgnet_forward_pallas.1} parent=0
    #allocation3 [shape = 'u8[1024]{0}', space=vmem, size = 0x400, scoped, tag = 'output window, operand 0, single buffered']
    #allocation4 [shape = 's32[1]{0}', space=sflag, size = 0x4, scoped, tag = 'scoped memory for drgnet_forward_pallas.1']
    %30 = vsyncpa [#allocation4], 0
    // Predicated region
    $region2: #{drgnet_forward_pallas.1} parent=1 // pred_check
      _
    $region3: #{drgnet_forward_pallas.1} parent=1 // pred_check_branch
      %32 = sbr.rel (0) target = $region5
    $region4: #{drgnet_forward_pallas.1} parent=1 // pred_region
      _
    $region5: #{drgnet_forward_pallas.1} parent=1 // pred_fallthru
      _
    // Predicated region
    $region6: #{drgnet_forward_pallas.1} parent=1 // pred_check
      _
    $region7: #{drgnet_forward_pallas.1} parent=1 // pred_check_branch
      %34 = sbr.rel (0) target = $region9
    $region8: #{drgnet_forward_pallas.1} parent=1 // pred_region
      _
    $region9: #{drgnet_forward_pallas.1} parent=1 // pred_fallthru
      _
    // Predicated region
    $region10: #{drgnet_forward_pallas.1} parent=1 // pred_check
      _
    $region11: #{drgnet_forward_pallas.1} parent=1 // pred_check_branch
      %36 = sbr.rel (0) target = $region13
    $region12: #{drgnet_forward_pallas.1} parent=1 // pred_region
      _
    $region13: #{drgnet_forward_pallas.1} parent=1 // pred_fallthru
      _
    // Predicated region
    $region14: #{drgnet_forward_pallas.1} parent=1 // pred_check
      _
    $region15: #{drgnet_forward_pallas.1} parent=1 // pred_check_branch
      %38 = sbr.rel (0) target = $region17
    $region16: #{drgnet_forward_pallas.1} parent=1 // pred_region
      _
    $region17: #{drgnet_forward_pallas.1} parent=1 // pred_fallthru
      _
    // Predicated region
    $region18: #{drgnet_forward_pallas.1} parent=1 // pred_check
      _
    $region19: #{drgnet_forward_pallas.1} parent=1 // pred_check_branch
      %40 = sbr.rel (0) target = $region21
    $region20: #{drgnet_forward_pallas.1} parent=1 // pred_region
      _
    $region21: #{drgnet_forward_pallas.1} parent=1 // pred_fallthru
      _
    // Predicated region
    $region22: #{drgnet_forward_pallas.1} parent=1 // pred_check
      _
    $region23: #{drgnet_forward_pallas.1} parent=1 // pred_check_branch
      %42 = sbr.rel (0) target = $region25
    $region24: #{drgnet_forward_pallas.1} parent=1 // pred_region
      _
    $region25: #{drgnet_forward_pallas.1} parent=1 // pred_fallthru
      _
    // Predicated region
    $region26: #{drgnet_forward_pallas.1} parent=1 // pred_check
      _
    $region27: #{drgnet_forward_pallas.1} parent=1 // pred_check_branch
      %44 = sbr.rel (0) target = $region29
    $region28: #{drgnet_forward_pallas.1} parent=1 // pred_region
      _
    $region29: #{drgnet_forward_pallas.1} parent=1 // pred_fallthru
      _
    // Predicated region
    $region30: #{drgnet_forward_pallas.1} parent=1 // pred_check
      _
    $region31: #{drgnet_forward_pallas.1} parent=1 // pred_check_branch
      %46 = sbr.rel (0) target = $region33
    $region32: #{drgnet_forward_pallas.1} parent=1 // pred_region
      _
    $region33: #{drgnet_forward_pallas.1} parent=1 // pred_fallthru
      _
    // Predicated region
    $region34: #{drgnet_forward_pallas.1} parent=1 // pred_check
      _
    $region35: #{drgnet_forward_pallas.1} parent=1 // pred_check_branch
      %48 = sbr.rel (0) target = $region37
    $region36: #{drgnet_forward_pallas.1} parent=1 // pred_region
      _
    $region37: #{drgnet_forward_pallas.1} parent=1 // pred_fallthru
      _
    // Predicated region
    $region38: #{drgnet_forward_pallas.1} parent=1 // pred_check
      _
    $region39: #{drgnet_forward_pallas.1} parent=1 // pred_check_branch
      %50 = sbr.rel (0) target = $region41
    $region40: #{drgnet_forward_pallas.1} parent=1 // pred_region
      _
    $region41: #{drgnet_forward_pallas.1} parent=1 // pred_fallthru
      _
    // Predicated region
    $region42: #{drgnet_forward_pallas.1} parent=1 // pred_check
      _
    $region43: #{drgnet_forward_pallas.1} parent=1 // pred_check_branch
      %52 = sbr.rel (0) target = $region45
    $region44: #{drgnet_forward_pallas.1} parent=1 // pred_region
      _
    $region45: #{drgnet_forward_pallas.1} parent=1 // pred_fallthru
      _
    // Predicated region
    $region46: #{drgnet_forward_pallas.1} parent=1 // pred_check
      _
    $region47: #{drgnet_forward_pallas.1} parent=1 // pred_check_branch
      %54 = sbr.rel (0) target = $region49
    $region48: #{drgnet_forward_pallas.1} parent=1 // pred_region
      _
    $region49: #{drgnet_forward_pallas.1} parent=1 // pred_fallthru
      _
    // Predicated region
    $region50: #{drgnet_forward_pallas.1} parent=1 // pred_check
      _
    $region51: #{drgnet_forward_pallas.1} parent=1 // pred_check_branch
      %56 = sbr.rel (0) target = $region53
    $region52: #{drgnet_forward_pallas.1} parent=1 // pred_region
      _
    $region53: #{drgnet_forward_pallas.1} parent=1 // pred_fallthru
      _
    // Predicated region
    $region54: #{drgnet_forward_pallas.1} parent=1 // pred_check
      _
    $region55: #{drgnet_forward_pallas.1} parent=1 // pred_check_branch
      %58 = sbr.rel (0) target = $region57
    $region56: #{drgnet_forward_pallas.1} parent=1 // pred_region
      _
    $region57: #{drgnet_forward_pallas.1} parent=1 // pred_fallthru
      _
    // Predicated region
    $region58: #{drgnet_forward_pallas.1} parent=1 // pred_check
      _
    $region59: #{drgnet_forward_pallas.1} parent=1 // pred_check_branch
      %60 = sbr.rel (0) target = $region61
    $region60: #{drgnet_forward_pallas.1} parent=1 // pred_region
      _
    $region61: #{drgnet_forward_pallas.1} parent=1 // pred_fallthru
      _
    // Predicated region
    $region62: #{drgnet_forward_pallas.1} parent=1 // pred_check
      _
    $region63: #{drgnet_forward_pallas.1} parent=1 // pred_check_branch
      %62 = sbr.rel (0) target = $region65
    $region64: #{drgnet_forward_pallas.1} parent=1 // pred_region
      _
    $region65: #{drgnet_forward_pallas.1} parent=1 // pred_fallthru
      _
    // Predicated region
    $region66: #{drgnet_forward_pallas.1} parent=1 // pred_check
      _
    $region67: #{drgnet_forward_pallas.1} parent=1 // pred_check_branch
      %64 = sbr.rel (0) target = $region69
    $region68: #{drgnet_forward_pallas.1} parent=1 // pred_region
      _
    $region69: #{drgnet_forward_pallas.1} parent=1 // pred_fallthru
      _
    // Predicated region
    $region70: #{drgnet_forward_pallas.1} parent=1 // pred_check
      _
    $region71: #{drgnet_forward_pallas.1} parent=1 // pred_check_branch
      %66 = sbr.rel (0) target = $region73
    $region72: #{drgnet_forward_pallas.1} parent=1 // pred_region
      _
    $region73: #{drgnet_forward_pallas.1} parent=1 // pred_fallthru
      _
    // Predicated region
    $region74: #{drgnet_forward_pallas.1} parent=1 // pred_check
      _
    $region75: #{drgnet_forward_pallas.1} parent=1 // pred_check_branch
      %68 = sbr.rel (0) target = $region77
    $region76: #{drgnet_forward_pallas.1} parent=1 // pred_region
      _
    $region77: #{drgnet_forward_pallas.1} parent=1 // pred_fallthru
      _
    // Predicated region
    $region78: #{drgnet_forward_pallas.1} parent=1 // pred_check
      _
    $region79: #{drgnet_forward_pallas.1} parent=1 // pred_check_branch
      %70 = sbr.rel (0) target = $region81
    $region80: #{drgnet_forward_pallas.1} parent=1 // pred_region
      _
    $region81: #{drgnet_forward_pallas.1} parent=1 // pred_fallthru
      _
    // Predicated region
    $region82: #{drgnet_forward_pallas.1} parent=1 // pred_check
      _
    $region83: #{drgnet_forward_pallas.1} parent=1 // pred_check_branch
      %72 = sbr.rel (0) target = $region85
    $region84: #{drgnet_forward_pallas.1} parent=1 // pred_region
      _
    $region85: #{drgnet_forward_pallas.1} parent=1 // pred_fallthru
      _
    // Predicated region
    $region86: #{drgnet_forward_pallas.1} parent=1 // pred_check
      _
    $region87: #{drgnet_forward_pallas.1} parent=1 // pred_check_branch
      %74 = sbr.rel (0) target = $region89
    $region88: #{drgnet_forward_pallas.1} parent=1 // pred_region
      _
    $region89: #{drgnet_forward_pallas.1} parent=1 // pred_fallthru
      _
    // Predicated region
    $region90: #{drgnet_forward_pallas.1} parent=1 // pred_check
      _
    $region91: #{drgnet_forward_pallas.1} parent=1 // pred_check_branch
      %76 = sbr.rel (0) target = $region93
    $region92: #{drgnet_forward_pallas.1} parent=1 // pred_region
      _
    $region93: #{drgnet_forward_pallas.1} parent=1 // pred_fallthru
      _
    %v77 = vld [vmem:[%s0] sm:$0xff]
    %v78 = vld [vmem:[%s0 + $0x8] sm:$0xff]
    %v79 = vld [vmem:[%s0 + $0x10] sm:$0xf]
    %v80 = vld [vmem:[%s1] sm:$0xff]
    %v81 = vld [vmem:[%s1 + $0x8] sm:$0xff]
    %v82 = vld [vmem:[%s1 + $0x10] sm:$0xf]
    %v83 = vld [vmem:[%s4] sm:$0xff]
    %v84 = vld [vmem:[%s5] sm:$0xff]
    %v85 = vld [vmem:[%s6] sm:$0x1]
    %vm86 = vcmask 162816
    %v88 = vsel %vm86, %v77, 0
    %v91 = vsel %vm86, %v78, 0
    %v94 = vsel %vm86, %v79, 0
    %vm96 = vcmask 1043456
    %v98 = vsel %vm96, %v82, 0
    %100 = vmatprep.subr.mxu0 0.0
    %101 = vmatpush1.msra.mxu0 0.0
    %102 = vmatprep.subr.mxu0 0.0
    %103 = vmatpush1.msra.mxu0 0.0
    %104 = vmatprep.subr.mxu0 0.0
    %105 = vmatpush1.msra.mxu0 0.0
    %106 = vmatprep.subr.mxu0 0.0
    %107 = vmatpush1.msra.mxu0 0.0
    %108 = vmatprep.subr.mxu0 0.0
    %109 = vmatpush1.msra.mxu0 0.0
    %110 = vmatprep.subr.mxu0 0.0
    %111 = vmatpush1.msra.mxu0 0.0
    %112 = vmatprep.subr.mxu0 0.0
    %113 = vmatpush1.msra.mxu0 0.0
    %114 = vmatprep.subr.mxu0 0.0
    %115 = vmatpush1.msra.mxu0 0.0
    %116 = vmatprep.subr.mxu0 0.0
    %117 = vmatpush1.msra.mxu0 0.0
    %118 = vmatprep.subr.mxu0 0.0
    %119 = vmatpush1.msra.mxu0 0.0
    %120 = vmatprep.subr.mxu0 0.0
    %121 = vmatpush1.msra.mxu0 0.0
    %122 = vmatprep.subr.mxu0 0.0
    %123 = vmatpush1.msra.mxu0 0.0
    %124 = vmatprep.subr.mxu0 0.0
    %125 = vmatpush1.msra.mxu0 0.0
    %126 = vmatprep.subr.mxu0 0.0
    %127 = vmatpush1.msra.mxu0 %v98
    %128 = vmatprep.subr.mxu0 0.0
    %129 = vmatpush1.msra.mxu0 %v81
    %130 = vmatprep.subr.mxu0 0.0
    %131 = vmatpush1.msra.mxu0 %v80
    %132 = vmatprep.subr.mxu0 0.0
    %133 = vmatpush2.msra.mxu0 0.0
    %134 = vmatprep.subr.mxu0 0.0
    %135 = vmatpush2.msra.mxu0 0.0
    %136 = vmatprep.subr.mxu0 0.0
    %137 = vmatpush2.msra.mxu0 0.0
    %138 = vmatprep.subr.mxu0 0.0
    %139 = vmatpush2.msra.mxu0 0.0
    %140 = vmatprep.subr.mxu0 0.0
    %141 = vmatpush2.msra.mxu0 0.0
    %142 = vmatprep.subr.mxu0 0.0
    %143 = vmatpush2.msra.mxu0 0.0
    %144 = vmatprep.subr.mxu0 0.0
    %145 = vmatpush2.msra.mxu0 0.0
    %146 = vmatprep.subr.mxu0 0.0
    %147 = vmatpush2.msra.mxu0 0.0
    %148 = vmatprep.subr.mxu0 0.0
    %149 = vmatpush2.msra.mxu0 0.0
    %150 = vmatprep.subr.mxu0 0.0
    %151 = vmatpush2.msra.mxu0 0.0
    %152 = vmatprep.subr.mxu0 0.0
    %153 = vmatpush2.msra.mxu0 0.0
    %154 = vmatprep.subr.mxu0 0.0
    %155 = vmatpush2.msra.mxu0 0.0
    %156 = vmatprep.subr.mxu0 0.0
    %157 = vmatpush2.msra.mxu0 0.0
    %158 = vmatprep.subr.mxu0 0.0
    %159 = vmatpush2.msra.mxu0 0.0
    %160 = vmatprep.subr.mxu0 0.0
    %161 = vmatpush2.msra.mxu0 0.0
    %162 = vmatprep.subr.mxu0 0.0
    %163 = vmatpush2.msra.mxu0 0.0
    %164 = vmatprep.mubr.f32.mxu0 0.0
    %165 = vmatmul.mubr.f32.gmra.mxu0 %v88
    %v166 = vpop.f32.mrf.mxu0
    %v167 = vadd.f32 0.0, %v166
    %v168 = vpop.f32.mrf.mxu0
    %169 = vmatprep.mubr.f32.mxu0 0.0
    %170 = vmatmul.mubr.f32.gmra.mxu0 %v91
    %v171 = vpop.f32.mrf.mxu0
    %v172 = vadd.f32 0.0, %v171
    %v173 = vpop.f32.mrf.mxu0
    %174 = vmatprep.mubr.f32.mxu0 0.0
    %175 = vmatmul.mubr.f32.gmra.mxu0 %v94
    %v176 = vpop.f32.mrf.mxu0
    %v177 = vadd.f32 0.0, %v176
    %v178 = vpop.f32.mrf.mxu0
    %179 = vdwg.mxu0
    %vm180 = vcmask 64512
    %v182 = vsel %vm180, %v80, 0
    %v185 = vsel %vm180, %v81, 0
    %v187 = vsel %vm180, %v82, 0
    %189 = vmatprep.subr.mxu0 0.0
    %190 = vmatpush1.msra.mxu0 0.0
    %191 = vmatprep.subr.mxu0 0.0
    %192 = vmatpush1.msra.mxu0 0.0
    %193 = vmatprep.subr.mxu0 0.0
    %194 = vmatpush1.msra.mxu0 0.0
    %195 = vmatprep.subr.mxu0 0.0
    %196 = vmatpush1.msra.mxu0 0.0
    %197 = vmatprep.subr.mxu0 0.0
    %198 = vmatpush1.msra.mxu0 0.0
    %199 = vmatprep.subr.mxu0 0.0
    %200 = vmatpush1.msra.mxu0 0.0
    %201 = vmatprep.subr.mxu0 0.0
    %202 = vmatpush1.msra.mxu0 0.0
    %203 = vmatprep.subr.mxu0 0.0
    %204 = vmatpush1.msra.mxu0 0.0
    %205 = vmatprep.subr.mxu0 0.0
    %206 = vmatpush1.msra.mxu0 0.0
    %207 = vmatprep.subr.mxu0 0.0
    %208 = vmatpush1.msra.mxu0 0.0
    %209 = vmatprep.subr.mxu0 0.0
    %210 = vmatpush1.msra.mxu0 0.0
    %211 = vmatprep.subr.mxu0 0.0
    %212 = vmatpush1.msra.mxu0 0.0
    %213 = vmatprep.subr.mxu0 0.0
    %214 = vmatpush1.msra.mxu0 0.0
    %215 = vmatprep.subr.mxu0 0.0
    %216 = vmatpush1.msra.mxu0 0.0
    %217 = vmatprep.subr.mxu0 0.0
    %218 = vmatpush1.msra.mxu0 0.0
    %219 = vmatprep.subr.mxu0 0.0
    %220 = vmatpush1.msra.mxu0 %v84
    %221 = vmatprep.subr.mxu0 0.0
    %222 = vmatpush2.msra.mxu0 0.0
    %223 = vmatprep.subr.mxu0 0.0
    %224 = vmatpush2.msra.mxu0 0.0
    %225 = vmatprep.subr.mxu0 0.0
    %226 = vmatpush2.msra.mxu0 0.0
    %227 = vmatprep.subr.mxu0 0.0
    %228 = vmatpush2.msra.mxu0 0.0
    %229 = vmatprep.subr.mxu0 0.0
    %230 = vmatpush2.msra.mxu0 0.0
    %231 = vmatprep.subr.mxu0 0.0
    %232 = vmatpush2.msra.mxu0 0.0
    %233 = vmatprep.subr.mxu0 0.0
    %234 = vmatpush2.msra.mxu0 0.0
    %235 = vmatprep.subr.mxu0 0.0
    %236 = vmatpush2.msra.mxu0 0.0
    %237 = vmatprep.subr.mxu0 0.0
    %238 = vmatpush2.msra.mxu0 0.0
    %239 = vmatprep.subr.mxu0 0.0
    %240 = vmatpush2.msra.mxu0 0.0
    %241 = vmatprep.subr.mxu0 0.0
    %242 = vmatpush2.msra.mxu0 0.0
    %243 = vmatprep.subr.mxu0 0.0
    %244 = vmatpush2.msra.mxu0 0.0
    %245 = vmatprep.subr.mxu0 0.0
    %246 = vmatpush2.msra.mxu0 0.0
    %247 = vmatprep.subr.mxu0 0.0
    %248 = vmatpush2.msra.mxu0 0.0
    %249 = vmatprep.subr.mxu0 0.0
    %250 = vmatpush2.msra.mxu0 0.0
    %251 = vmatprep.subr.mxu0 0.0
    %252 = vmatpush2.msra.mxu0 0.0
    %253 = vmatprep.mubr.f32.mxu0 0.0
    %254 = vmatmul.mubr.f32.gmra.mxu0 %v182
    %v255 = vpop.f32.mrf.mxu0
    %v256 = vadd.f32 0.0, %v255
    %v257 = vpop.f32.mrf.mxu0
    %258 = vmatprep.mubr.f32.mxu0 0.0
    %259 = vmatmul.mubr.f32.gmra.mxu0 %v185
    %v260 = vpop.f32.mrf.mxu0
    %v261 = vadd.f32 0.0, %v260
    %v262 = vpop.f32.mrf.mxu0
    %263 = vmatprep.mubr.f32.mxu0 0.0
    %264 = vmatmul.mubr.f32.gmra.mxu0 %v187
    %v265 = vpop.f32.mrf.mxu0
    %v266 = vadd.f32 0.0, %v265
    %v267 = vpop.f32.mrf.mxu0
    %268 = vdwg.mxu0
    %v270 = vsel %vm180, %v167, 0
    %v273 = vsel %vm180, %v172, 0
    %v276 = vsel %vm180, %v177, 0
    %278 = vmatprep.subr.mxu0 0.0
    %279 = vmatpush1.msra.mxu0 0.0
    %280 = vmatprep.subr.mxu0 0.0
    %281 = vmatpush1.msra.mxu0 0.0
    %282 = vmatprep.subr.mxu0 0.0
    %283 = vmatpush1.msra.mxu0 0.0
    %284 = vmatprep.subr.mxu0 0.0
    %285 = vmatpush1.msra.mxu0 0.0
    %286 = vmatprep.subr.mxu0 0.0
    %287 = vmatpush1.msra.mxu0 0.0
    %288 = vmatprep.subr.mxu0 0.0
    %289 = vmatpush1.msra.mxu0 0.0
    %290 = vmatprep.subr.mxu0 0.0
    %291 = vmatpush1.msra.mxu0 0.0
    %292 = vmatprep.subr.mxu0 0.0
    %293 = vmatpush1.msra.mxu0 0.0
    %294 = vmatprep.subr.mxu0 0.0
    %295 = vmatpush1.msra.mxu0 0.0
    %296 = vmatprep.subr.mxu0 0.0
    %297 = vmatpush1.msra.mxu0 0.0
    %298 = vmatprep.subr.mxu0 0.0
    %299 = vmatpush1.msra.mxu0 0.0
    %300 = vmatprep.subr.mxu0 0.0
    %301 = vmatpush1.msra.mxu0 0.0
    %302 = vmatprep.subr.mxu0 0.0
    %303 = vmatpush1.msra.mxu0 0.0
    %304 = vmatprep.subr.mxu0 0.0
    %305 = vmatpush1.msra.mxu0 0.0
    %306 = vmatprep.subr.mxu0 0.0
    %307 = vmatpush1.msra.mxu0 0.0
    %308 = vmatprep.subr.mxu0 0.0
    %309 = vmatpush1.msra.mxu0 %v83
    %310 = vmatprep.subr.mxu0 0.0
    %311 = vmatpush2.msra.mxu0 0.0
    %312 = vmatprep.subr.mxu0 0.0
    %313 = vmatpush2.msra.mxu0 0.0
    %314 = vmatprep.subr.mxu0 0.0
    %315 = vmatpush2.msra.mxu0 0.0
    %316 = vmatprep.subr.mxu0 0.0
    %317 = vmatpush2.msra.mxu0 0.0
    %318 = vmatprep.subr.mxu0 0.0
    %319 = vmatpush2.msra.mxu0 0.0
    %320 = vmatprep.subr.mxu0 0.0
    %321 = vmatpush2.msra.mxu0 0.0
    %322 = vmatprep.subr.mxu0 0.0
    %323 = vmatpush2.msra.mxu0 0.0
    %324 = vmatprep.subr.mxu0 0.0
    %325 = vmatpush2.msra.mxu0 0.0
    %326 = vmatprep.subr.mxu0 0.0
    %327 = vmatpush2.msra.mxu0 0.0
    %328 = vmatprep.subr.mxu0 0.0
    %329 = vmatpush2.msra.mxu0 0.0
    %330 = vmatprep.subr.mxu0 0.0
    %331 = vmatpush2.msra.mxu0 0.0
    %332 = vmatprep.subr.mxu0 0.0
    %333 = vmatpush2.msra.mxu0 0.0
    %334 = vmatprep.subr.mxu0 0.0
    %335 = vmatpush2.msra.mxu0 0.0
    %336 = vmatprep.subr.mxu0 0.0
    %337 = vmatpush2.msra.mxu0 0.0
    %338 = vmatprep.subr.mxu0 0.0
    %339 = vmatpush2.msra.mxu0 0.0
    %340 = vmatprep.subr.mxu0 0.0
    %341 = vmatpush2.msra.mxu0 0.0
    %342 = vmatprep.mubr.f32.mxu0 0.0
    %343 = vmatmul.mubr.f32.gmra.mxu0 %v270
    %v344 = vpop.f32.mrf.mxu0
    %v345 = vadd.f32 %v256, %v344
    %v346 = vpop.f32.mrf.mxu0
    %347 = vmatprep.mubr.f32.mxu0 0.0
    %348 = vmatmul.mubr.f32.gmra.mxu0 %v273
    %v349 = vpop.f32.mrf.mxu0
    %v350 = vadd.f32 %v261, %v349
    %v351 = vpop.f32.mrf.mxu0
    %352 = vmatprep.mubr.f32.mxu0 0.0
    %353 = vmatmul.mubr.f32.gmra.mxu0 %v276
    %v354 = vpop.f32.mrf.mxu0
    %v355 = vadd.f32 %v266, %v354
    %v356 = vpop.f32.mrf.mxu0
    %357 = vdwg.mxu0
    %v359 = vlaneseq
    %v360 = vshrl.u32 %v359, 7
    %v361 = vsub.s32 0, %v360
    %v362 = vrot.slane %v85, %v361
    %v364 = vadd.f32 %v345, %v362
    %v365 = vadd.f32 %v350, %v362
    %v366 = vadd.f32 %v355, %v362
    %vm367 = vcmp.gt.f32.partialorder %v364, 0.0
    %vm368 = vcmp.gt.f32.partialorder %v365, 0.0
    %vm369 = vcmp.gt.f32.partialorder %v366, 0.0
    %v370 = vmul.f32 %v364, 1.442695
    %v371 = vpow.pop %v370
    %v372 = vmul.f32 %v365, 1.442695
    %v373 = vpow.pop %v372
    %v374 = vmul.f32 %v366, 1.442695
    %v375 = vpow.pop %v374
    %v376 = vsub.f32 %v371, 1.0
    %v377 = vsub.f32 %v373, 1.0
    %v378 = vsub.f32 %v375, 1.0
    %v379 = vsel %vm367, %v364, %v376
    %v380 = vsel %vm368, %v365, %v377
    %v381 = vsel %vm369, %v366, %v378
    %v382 = vld [vmem:[%s7] sm:$0xff]
    %v383 = vld [vmem:[%s7 + $0x8] sm:$0xff]
    %v384 = vld [vmem:[%s7 + $0x10] sm:$0xff]
    %v385 = vld [vmem:[%s7 + $0x18] sm:$0xff]
    %v386 = vld [vmem:[%s8] sm:$0xff]
    %v387 = vld [vmem:[%s8 + $0x8] sm:$0xff]
    %v388 = vld [vmem:[%s8 + $0x10] sm:$0xff]
    %v389 = vld [vmem:[%s8 + $0x18] sm:$0xff]
    %v390 = vld [vmem:[%s9] sm:$0x1]
    %v392 = vsel %vm96, %v381, 0
    %394 = vmatprep.subr.mxu0 0.0
    %395 = vmatpush1.msra.mxu0 0.0
    %396 = vmatprep.subr.mxu0 0.0
    %397 = vmatpush1.msra.mxu0 0.0
    %398 = vmatprep.subr.mxu0 0.0
    %399 = vmatpush1.msra.mxu0 0.0
    %400 = vmatprep.subr.mxu0 0.0
    %401 = vmatpush1.msra.mxu0 0.0
    %402 = vmatprep.subr.mxu0 0.0
    %403 = vmatpush1.msra.mxu0 0.0
    %404 = vmatprep.subr.mxu0 0.0
    %405 = vmatpush1.msra.mxu0 0.0
    %406 = vmatprep.subr.mxu0 0.0
    %407 = vmatpush1.msra.mxu0 0.0
    %408 = vmatprep.subr.mxu0 0.0
    %409 = vmatpush1.msra.mxu0 0.0
    %410 = vmatprep.subr.mxu0 0.0
    %411 = vmatpush1.msra.mxu0 0.0
    %412 = vmatprep.subr.mxu0 0.0
    %413 = vmatpush1.msra.mxu0 0.0
    %414 = vmatprep.subr.mxu0 0.0
    %415 = vmatpush1.msra.mxu0 0.0
    %416 = vmatprep.subr.mxu0 0.0
    %417 = vmatpush1.msra.mxu0 0.0
    %418 = vmatprep.subr.mxu0 0.0
    %419 = vmatpush1.msra.mxu0 0.0
    %420 = vmatprep.subr.mxu0 0.0
    %421 = vmatpush1.msra.mxu0 %v392
    %422 = vmatprep.subr.mxu0 0.0
    %423 = vmatpush1.msra.mxu0 %v380
    %424 = vmatprep.subr.mxu0 0.0
    %425 = vmatpush1.msra.mxu0 %v379
    %426 = vmatprep.subr.mxu0 0.0
    %427 = vmatpush2.msra.mxu0 0.0
    %428 = vmatprep.subr.mxu0 0.0
    %429 = vmatpush2.msra.mxu0 0.0
    %430 = vmatprep.subr.mxu0 0.0
    %431 = vmatpush2.msra.mxu0 0.0
    %432 = vmatprep.subr.mxu0 0.0
    %433 = vmatpush2.msra.mxu0 0.0
    %434 = vmatprep.subr.mxu0 0.0
    %435 = vmatpush2.msra.mxu0 0.0
    %436 = vmatprep.subr.mxu0 0.0
    %437 = vmatpush2.msra.mxu0 0.0
    %438 = vmatprep.subr.mxu0 0.0
    %439 = vmatpush2.msra.mxu0 0.0
    %440 = vmatprep.subr.mxu0 0.0
    %441 = vmatpush2.msra.mxu0 0.0
    %442 = vmatprep.subr.mxu0 0.0
    %443 = vmatpush2.msra.mxu0 0.0
    %444 = vmatprep.subr.mxu0 0.0
    %445 = vmatpush2.msra.mxu0 0.0
    %446 = vmatprep.subr.mxu0 0.0
    %447 = vmatpush2.msra.mxu0 0.0
    %448 = vmatprep.subr.mxu0 0.0
    %449 = vmatpush2.msra.mxu0 0.0
    %450 = vmatprep.subr.mxu0 0.0
    %451 = vmatpush2.msra.mxu0 0.0
    %452 = vmatprep.subr.mxu0 0.0
    %453 = vmatpush2.msra.mxu0 0.0
    %454 = vmatprep.subr.mxu0 0.0
    %455 = vmatpush2.msra.mxu0 0.0
    %456 = vmatprep.subr.mxu0 0.0
    %457 = vmatpush2.msra.mxu0 0.0
    %458 = vmatprep.mubr.f32.mxu0 0.0
    %459 = vmatmul.mubr.f32.gmra.mxu0 %v88
    %v460 = vpop.f32.mrf.mxu0
    %v461 = vadd.f32 0.0, %v460
    %v462 = vpop.f32.mrf.mxu0
    %463 = vmatprep.mubr.f32.mxu0 0.0
    %464 = vmatmul.mubr.f32.gmra.mxu0 %v91
    %v465 = vpop.f32.mrf.mxu0
    %v466 = vadd.f32 0.0, %v465
    %v467 = vpop.f32.mrf.mxu0
    %468 = vmatprep.mubr.f32.mxu0 0.0
    %469 = vmatmul.mubr.f32.gmra.mxu0 %v94
    %v470 = vpop.f32.mrf.mxu0
    %v471 = vadd.f32 0.0, %v470
    %v472 = vpop.f32.mrf.mxu0
    %473 = vdwg.mxu0
    %vm474 = vcmask 261120
    %v476 = vsel %vm474, %v379, 0
    %v479 = vsel %vm474, %v380, 0
    %v481 = vsel %vm474, %v381, 0
    %483 = vmatprep.subr.mxu0 0.0
    %484 = vmatpush1.msra.mxu0 0.0
    %485 = vmatprep.subr.mxu0 0.0
    %486 = vmatpush1.msra.mxu0 0.0
    %487 = vmatprep.subr.mxu0 0.0
    %488 = vmatpush1.msra.mxu0 0.0
    %489 = vmatprep.subr.mxu0 0.0
    %490 = vmatpush1.msra.mxu0 0.0
    %491 = vmatprep.subr.mxu0 0.0
    %492 = vmatpush1.msra.mxu0 0.0
    %493 = vmatprep.subr.mxu0 0.0
    %494 = vmatpush1.msra.mxu0 0.0
    %495 = vmatprep.subr.mxu0 0.0
    %496 = vmatpush1.msra.mxu0 0.0
    %497 = vmatprep.subr.mxu0 0.0
    %498 = vmatpush1.msra.mxu0 0.0
    %499 = vmatprep.subr.mxu0 0.0
    %500 = vmatpush1.msra.mxu0 0.0
    %501 = vmatprep.subr.mxu0 0.0
    %502 = vmatpush1.msra.mxu0 0.0
    %503 = vmatprep.subr.mxu0 0.0
    %504 = vmatpush1.msra.mxu0 0.0
    %505 = vmatprep.subr.mxu0 0.0
    %506 = vmatpush1.msra.mxu0 0.0
    %507 = vmatprep.subr.mxu0 0.0
    %508 = vmatpush1.msra.mxu0 %v389
    %509 = vmatprep.subr.mxu0 0.0
    %510 = vmatpush1.msra.mxu0 %v388
    %511 = vmatprep.subr.mxu0 0.0
    %512 = vmatpush1.msra.mxu0 %v387
    %513 = vmatprep.subr.mxu0 0.0
    %514 = vmatpush1.msra.mxu0 %v386
    %515 = vmatprep.subr.mxu0 0.0
    %516 = vmatpush2.msra.mxu0 0.0
    %517 = vmatprep.subr.mxu0 0.0
    %518 = vmatpush2.msra.mxu0 0.0
    %519 = vmatprep.subr.mxu0 0.0
    %520 = vmatpush2.msra.mxu0 0.0
    %521 = vmatprep.subr.mxu0 0.0
    %522 = vmatpush2.msra.mxu0 0.0
    %523 = vmatprep.subr.mxu0 0.0
    %524 = vmatpush2.msra.mxu0 0.0
    %525 = vmatprep.subr.mxu0 0.0
    %526 = vmatpush2.msra.mxu0 0.0
    %527 = vmatprep.subr.mxu0 0.0
    %528 = vmatpush2.msra.mxu0 0.0
    %529 = vmatprep.subr.mxu0 0.0
    %530 = vmatpush2.msra.mxu0 0.0
    %531 = vmatprep.subr.mxu0 0.0
    %532 = vmatpush2.msra.mxu0 0.0
    %533 = vmatprep.subr.mxu0 0.0
    %534 = vmatpush2.msra.mxu0 0.0
    %535 = vmatprep.subr.mxu0 0.0
    %536 = vmatpush2.msra.mxu0 0.0
    %537 = vmatprep.subr.mxu0 0.0
    %538 = vmatpush2.msra.mxu0 0.0
    %539 = vmatprep.subr.mxu0 0.0
    %540 = vmatpush2.msra.mxu0 0.0
    %541 = vmatprep.subr.mxu0 0.0
    %542 = vmatpush2.msra.mxu0 0.0
    %543 = vmatprep.subr.mxu0 0.0
    %544 = vmatpush2.msra.mxu0 0.0
    %545 = vmatprep.subr.mxu0 0.0
    %546 = vmatpush2.msra.mxu0 0.0
    %547 = vmatprep.mubr.f32.mxu0 0.0
    %548 = vmatmul.mubr.f32.gmra.mxu0 %v476
    %v549 = vpop.f32.mrf.mxu0
    %v550 = vadd.f32 0.0, %v549
    %v551 = vpop.f32.mrf.mxu0
    %552 = vmatprep.mubr.f32.mxu0 0.0
    %553 = vmatmul.mubr.f32.gmra.mxu0 %v479
    %v554 = vpop.f32.mrf.mxu0
    %v555 = vadd.f32 0.0, %v554
    %v556 = vpop.f32.mrf.mxu0
    %557 = vmatprep.mubr.f32.mxu0 0.0
    %558 = vmatmul.mubr.f32.gmra.mxu0 %v481
    %v559 = vpop.f32.mrf.mxu0
    %v560 = vadd.f32 0.0, %v559
    %v561 = vpop.f32.mrf.mxu0
    %562 = vdwg.mxu0
    %v564 = vsel %vm474, %v461, 0
    %v567 = vsel %vm474, %v466, 0
    %v570 = vsel %vm474, %v471, 0
    %572 = vmatprep.subr.mxu0 0.0
    %573 = vmatpush1.msra.mxu0 0.0
    %574 = vmatprep.subr.mxu0 0.0
    %575 = vmatpush1.msra.mxu0 0.0
    %576 = vmatprep.subr.mxu0 0.0
    %577 = vmatpush1.msra.mxu0 0.0
    %578 = vmatprep.subr.mxu0 0.0
    %579 = vmatpush1.msra.mxu0 0.0
    %580 = vmatprep.subr.mxu0 0.0
    %581 = vmatpush1.msra.mxu0 0.0
    %582 = vmatprep.subr.mxu0 0.0
    %583 = vmatpush1.msra.mxu0 0.0
    %584 = vmatprep.subr.mxu0 0.0
    %585 = vmatpush1.msra.mxu0 0.0
    %586 = vmatprep.subr.mxu0 0.0
    %587 = vmatpush1.msra.mxu0 0.0
    %588 = vmatprep.subr.mxu0 0.0
    %589 = vmatpush1.msra.mxu0 0.0
    %590 = vmatprep.subr.mxu0 0.0
    %591 = vmatpush1.msra.mxu0 0.0
    %592 = vmatprep.subr.mxu0 0.0
    %593 = vmatpush1.msra.mxu0 0.0
    %594 = vmatprep.subr.mxu0 0.0
    %595 = vmatpush1.msra.mxu0 0.0
    %596 = vmatprep.subr.mxu0 0.0
    %597 = vmatpush1.msra.mxu0 %v385
    %598 = vmatprep.subr.mxu0 0.0
    %599 = vmatpush1.msra.mxu0 %v384
    %600 = vmatprep.subr.mxu0 0.0
    %601 = vmatpush1.msra.mxu0 %v383
    %602 = vmatprep.subr.mxu0 0.0
    %603 = vmatpush1.msra.mxu0 %v382
    %604 = vmatprep.subr.mxu0 0.0
    %605 = vmatpush2.msra.mxu0 0.0
    %606 = vmatprep.subr.mxu0 0.0
    %607 = vmatpush2.msra.mxu0 0.0
    %608 = vmatprep.subr.mxu0 0.0
    %609 = vmatpush2.msra.mxu0 0.0
    %610 = vmatprep.subr.mxu0 0.0
    %611 = vmatpush2.msra.mxu0 0.0
    %612 = vmatprep.subr.mxu0 0.0
    %613 = vmatpush2.msra.mxu0 0.0
    %614 = vmatprep.subr.mxu0 0.0
    %615 = vmatpush2.msra.mxu0 0.0
    %616 = vmatprep.subr.mxu0 0.0
    %617 = vmatpush2.msra.mxu0 0.0
    %618 = vmatprep.subr.mxu0 0.0
    %619 = vmatpush2.msra.mxu0 0.0
    %620 = vmatprep.subr.mxu0 0.0
    %621 = vmatpush2.msra.mxu0 0.0
    %622 = vmatprep.subr.mxu0 0.0
    %623 = vmatpush2.msra.mxu0 0.0
    %624 = vmatprep.subr.mxu0 0.0
    %625 = vmatpush2.msra.mxu0 0.0
    %626 = vmatprep.subr.mxu0 0.0
    %627 = vmatpush2.msra.mxu0 0.0
    %628 = vmatprep.subr.mxu0 0.0
    %629 = vmatpush2.msra.mxu0 0.0
    %630 = vmatprep.subr.mxu0 0.0
    %631 = vmatpush2.msra.mxu0 0.0
    %632 = vmatprep.subr.mxu0 0.0
    %633 = vmatpush2.msra.mxu0 0.0
    %634 = vmatprep.subr.mxu0 0.0
    %635 = vmatpush2.msra.mxu0 0.0
    %636 = vmatprep.mubr.f32.mxu0 0.0
    %637 = vmatmul.mubr.f32.gmra.mxu0 %v564
    %v638 = vpop.f32.mrf.mxu0
    %v639 = vadd.f32 %v550, %v638
    %v640 = vpop.f32.mrf.mxu0
    %641 = vmatprep.mubr.f32.mxu0 0.0
    %642 = vmatmul.mubr.f32.gmra.mxu0 %v567
    %v643 = vpop.f32.mrf.mxu0
    %v644 = vadd.f32 %v555, %v643
    %v645 = vpop.f32.mrf.mxu0
    %646 = vmatprep.mubr.f32.mxu0 0.0
    %647 = vmatmul.mubr.f32.gmra.mxu0 %v570
    %v648 = vpop.f32.mrf.mxu0
    %v649 = vadd.f32 %v560, %v648
    %v650 = vpop.f32.mrf.mxu0
    %651 = vdwg.mxu0
    %v653 = vlaneseq
    %v654 = vshrl.u32 %v653, 7
    %v655 = vsub.s32 0, %v654
    %v656 = vrot.slane %v390, %v655
    %v658 = vadd.f32 %v639, %v656
    %v659 = vadd.f32 %v644, %v656
    %v660 = vadd.f32 %v649, %v656
    %vm661 = vcmp.gt.f32.partialorder %v658, 0.0
    %vm662 = vcmp.gt.f32.partialorder %v659, 0.0
    %vm663 = vcmp.gt.f32.partialorder %v660, 0.0
    %v664 = vmul.f32 %v658, 1.442695
    %v665 = vpow.pop %v664
    %v666 = vmul.f32 %v659, 1.442695
    %v667 = vpow.pop %v666
    %v668 = vmul.f32 %v660, 1.442695
    %v669 = vpow.pop %v668
    %v670 = vsub.f32 %v665, 1.0
    %v671 = vsub.f32 %v667, 1.0
    %v672 = vsub.f32 %v669, 1.0
    %v673 = vsel %vm661, %v658, %v670
    %v674 = vsel %vm662, %v659, %v671
    %v675 = vsel %vm663, %v660, %v672
    %v676 = vld [vmem:[%s10] sm:$0xff]
    %v677 = vld [vmem:[%s10 + $0x8] sm:$0xff]
    %v678 = vld [vmem:[%s10 + $0x10] sm:$0xff]
    %v679 = vld [vmem:[%s10 + $0x18] sm:$0xff]
    %v680 = vld [vmem:[%s11] sm:$0xff]
    %v681 = vld [vmem:[%s11 + $0x8] sm:$0xff]
    %v682 = vld [vmem:[%s11 + $0x10] sm:$0xff]
    %v683 = vld [vmem:[%s11 + $0x18] sm:$0xff]
    %v684 = vld [vmem:[#allocation2] sm:$0x1]
    %v686 = vsel %vm96, %v675, 0
    %688 = vmatprep.subr.mxu0 0.0
    %689 = vmatpush1.msra.mxu0 0.0
    %690 = vmatprep.subr.mxu0 0.0
    %691 = vmatpush1.msra.mxu0 0.0
    %692 = vmatprep.subr.mxu0 0.0
    %693 = vmatpush1.msra.mxu0 0.0
    %694 = vmatprep.subr.mxu0 0.0
    %695 = vmatpush1.msra.mxu0 0.0
    %696 = vmatprep.subr.mxu0 0.0
    %697 = vmatpush1.msra.mxu0 0.0
    %698 = vmatprep.subr.mxu0 0.0
    %699 = vmatpush1.msra.mxu0 0.0
    %700 = vmatprep.subr.mxu0 0.0
    %701 = vmatpush1.msra.mxu0 0.0
    %702 = vmatprep.subr.mxu0 0.0
    %703 = vmatpush1.msra.mxu0 0.0
    %704 = vmatprep.subr.mxu0 0.0
    %705 = vmatpush1.msra.mxu0 0.0
    %706 = vmatprep.subr.mxu0 0.0
    %707 = vmatpush1.msra.mxu0 0.0
    %708 = vmatprep.subr.mxu0 0.0
    %709 = vmatpush1.msra.mxu0 0.0
    %710 = vmatprep.subr.mxu0 0.0
    %711 = vmatpush1.msra.mxu0 0.0
    %712 = vmatprep.subr.mxu0 0.0
    %713 = vmatpush1.msra.mxu0 0.0
    %714 = vmatprep.subr.mxu0 0.0
    %715 = vmatpush1.msra.mxu0 %v686
    %716 = vmatprep.subr.mxu0 0.0
    %717 = vmatpush1.msra.mxu0 %v674
    %718 = vmatprep.subr.mxu0 0.0
    %719 = vmatpush1.msra.mxu0 %v673
    %720 = vmatprep.subr.mxu0 0.0
    %721 = vmatpush2.msra.mxu0 0.0
    %722 = vmatprep.subr.mxu0 0.0
    %723 = vmatpush2.msra.mxu0 0.0
    %724 = vmatprep.subr.mxu0 0.0
    %725 = vmatpush2.msra.mxu0 0.0
    %726 = vmatprep.subr.mxu0 0.0
    %727 = vmatpush2.msra.mxu0 0.0
    %728 = vmatprep.subr.mxu0 0.0
    %729 = vmatpush2.msra.mxu0 0.0
    %730 = vmatprep.subr.mxu0 0.0
    %731 = vmatpush2.msra.mxu0 0.0
    %732 = vmatprep.subr.mxu0 0.0
    %733 = vmatpush2.msra.mxu0 0.0
    %734 = vmatprep.subr.mxu0 0.0
    %735 = vmatpush2.msra.mxu0 0.0
    %736 = vmatprep.subr.mxu0 0.0
    %737 = vmatpush2.msra.mxu0 0.0
    %738 = vmatprep.subr.mxu0 0.0
    %739 = vmatpush2.msra.mxu0 0.0
    %740 = vmatprep.subr.mxu0 0.0
    %741 = vmatpush2.msra.mxu0 0.0
    %742 = vmatprep.subr.mxu0 0.0
    %743 = vmatpush2.msra.mxu0 0.0
    %744 = vmatprep.subr.mxu0 0.0
    %745 = vmatpush2.msra.mxu0 0.0
    %746 = vmatprep.subr.mxu0 0.0
    %747 = vmatpush2.msra.mxu0 0.0
    %748 = vmatprep.subr.mxu0 0.0
    %749 = vmatpush2.msra.mxu0 0.0
    %750 = vmatprep.subr.mxu0 0.0
    %751 = vmatpush2.msra.mxu0 0.0
    %752 = vmatprep.mubr.f32.mxu0 0.0
    %753 = vmatmul.mubr.f32.gmra.mxu0 %v88
    %v754 = vpop.f32.mrf.mxu0
    %v755 = vadd.f32 0.0, %v754
    %v756 = vpop.f32.mrf.mxu0
    %757 = vmatprep.mubr.f32.mxu0 0.0
    %758 = vmatmul.mubr.f32.gmra.mxu0 %v91
    %v759 = vpop.f32.mrf.mxu0
    %v760 = vadd.f32 0.0, %v759
    %v761 = vpop.f32.mrf.mxu0
    %762 = vmatprep.mubr.f32.mxu0 0.0
    %763 = vmatmul.mubr.f32.gmra.mxu0 %v94
    %v764 = vpop.f32.mrf.mxu0
    %v765 = vadd.f32 0.0, %v764
    %v766 = vpop.f32.mrf.mxu0
    %767 = vdwg.mxu0
    %v769 = vsel %vm474, %v673, 0
    %v772 = vsel %vm474, %v674, 0
    %v774 = vsel %vm474, %v675, 0
    %776 = vmatprep.subr.mxu0 0.0
    %777 = vmatpush1.msra.mxu0 0.0
    %778 = vmatprep.subr.mxu0 0.0
    %779 = vmatpush1.msra.mxu0 0.0
    %780 = vmatprep.subr.mxu0 0.0
    %781 = vmatpush1.msra.mxu0 0.0
    %782 = vmatprep.subr.mxu0 0.0
    %783 = vmatpush1.msra.mxu0 0.0
    %784 = vmatprep.subr.mxu0 0.0
    %785 = vmatpush1.msra.mxu0 0.0
    %786 = vmatprep.subr.mxu0 0.0
    %787 = vmatpush1.msra.mxu0 0.0
    %788 = vmatprep.subr.mxu0 0.0
    %789 = vmatpush1.msra.mxu0 0.0
    %790 = vmatprep.subr.mxu0 0.0
    %791 = vmatpush1.msra.mxu0 0.0
    %792 = vmatprep.subr.mxu0 0.0
    %793 = vmatpush1.msra.mxu0 0.0
    %794 = vmatprep.subr.mxu0 0.0
    %795 = vmatpush1.msra.mxu0 0.0
    %796 = vmatprep.subr.mxu0 0.0
    %797 = vmatpush1.msra.mxu0 0.0
    %798 = vmatprep.subr.mxu0 0.0
    %799 = vmatpush1.msra.mxu0 0.0
    %800 = vmatprep.subr.mxu0 0.0
    %801 = vmatpush1.msra.mxu0 %v683
    %802 = vmatprep.subr.mxu0 0.0
    %803 = vmatpush1.msra.mxu0 %v682
    %804 = vmatprep.subr.mxu0 0.0
    %805 = vmatpush1.msra.mxu0 %v681
    %806 = vmatprep.subr.mxu0 0.0
    %807 = vmatpush1.msra.mxu0 %v680
    %808 = vmatprep.subr.mxu0 0.0
    %809 = vmatpush2.msra.mxu0 0.0
    %810 = vmatprep.subr.mxu0 0.0
    %811 = vmatpush2.msra.mxu0 0.0
    %812 = vmatprep.subr.mxu0 0.0
    %813 = vmatpush2.msra.mxu0 0.0
    %814 = vmatprep.subr.mxu0 0.0
    %815 = vmatpush2.msra.mxu0 0.0
    %816 = vmatprep.subr.mxu0 0.0
    %817 = vmatpush2.msra.mxu0 0.0
    %818 = vmatprep.subr.mxu0 0.0
    %819 = vmatpush2.msra.mxu0 0.0
    %820 = vmatprep.subr.mxu0 0.0
    %821 = vmatpush2.msra.mxu0 0.0
    %822 = vmatprep.subr.mxu0 0.0
    %823 = vmatpush2.msra.mxu0 0.0
    %824 = vmatprep.subr.mxu0 0.0
    %825 = vmatpush2.msra.mxu0 0.0
    %826 = vmatprep.subr.mxu0 0.0
    %827 = vmatpush2.msra.mxu0 0.0
    %828 = vmatprep.subr.mxu0 0.0
    %829 = vmatpush2.msra.mxu0 0.0
    %830 = vmatprep.subr.mxu0 0.0
    %831 = vmatpush2.msra.mxu0 0.0
    %832 = vmatprep.subr.mxu0 0.0
    %833 = vmatpush2.msra.mxu0 0.0
    %834 = vmatprep.subr.mxu0 0.0
    %835 = vmatpush2.msra.mxu0 0.0
    %836 = vmatprep.subr.mxu0 0.0
    %837 = vmatpush2.msra.mxu0 0.0
    %838 = vmatprep.subr.mxu0 0.0
    %839 = vmatpush2.msra.mxu0 0.0
    %840 = vmatprep.mubr.f32.mxu0 0.0
    %841 = vmatmul.mubr.f32.gmra.mxu0 %v769
    %v842 = vpop.f32.mrf.mxu0
    %v843 = vadd.f32 0.0, %v842
    %v844 = vpop.f32.mrf.mxu0
    %845 = vmatprep.mubr.f32.mxu0 0.0
    %846 = vmatmul.mubr.f32.gmra.mxu0 %v772
    %v847 = vpop.f32.mrf.mxu0
    %v848 = vadd.f32 0.0, %v847
    %v849 = vpop.f32.mrf.mxu0
    %850 = vmatprep.mubr.f32.mxu0 0.0
    %851 = vmatmul.mubr.f32.gmra.mxu0 %v774
    %v852 = vpop.f32.mrf.mxu0
    %v853 = vadd.f32 0.0, %v852
    %v854 = vpop.f32.mrf.mxu0
    %855 = vdwg.mxu0
    %v857 = vsel %vm474, %v755, 0
    %v860 = vsel %vm474, %v760, 0
    %v863 = vsel %vm474, %v765, 0
    %865 = vmatprep.subr.mxu0 0.0
    %866 = vmatpush1.msra.mxu0 0.0
    %867 = vmatprep.subr.mxu0 0.0
    %868 = vmatpush1.msra.mxu0 0.0
    %869 = vmatprep.subr.mxu0 0.0
    %870 = vmatpush1.msra.mxu0 0.0
    %871 = vmatprep.subr.mxu0 0.0
    %872 = vmatpush1.msra.mxu0 0.0
    %873 = vmatprep.subr.mxu0 0.0
    %874 = vmatpush1.msra.mxu0 0.0
    %875 = vmatprep.subr.mxu0 0.0
    %876 = vmatpush1.msra.mxu0 0.0
    %877 = vmatprep.subr.mxu0 0.0
    %878 = vmatpush1.msra.mxu0 0.0
    %879 = vmatprep.subr.mxu0 0.0
    %880 = vmatpush1.msra.mxu0 0.0
    %881 = vmatprep.subr.mxu0 0.0
    %882 = vmatpush1.msra.mxu0 0.0
    %883 = vmatprep.subr.mxu0 0.0
    %884 = vmatpush1.msra.mxu0 0.0
    %885 = vmatprep.subr.mxu0 0.0
    %886 = vmatpush1.msra.mxu0 0.0
    %887 = vmatprep.subr.mxu0 0.0
    %888 = vmatpush1.msra.mxu0 0.0
    %889 = vmatprep.subr.mxu0 0.0
    %890 = vmatpush1.msra.mxu0 %v679
    %891 = vmatprep.subr.mxu0 0.0
    %892 = vmatpush1.msra.mxu0 %v678
    %893 = vmatprep.subr.mxu0 0.0
    %894 = vmatpush1.msra.mxu0 %v677
    %895 = vmatprep.subr.mxu0 0.0
    %896 = vmatpush1.msra.mxu0 %v676
    %897 = vmatprep.subr.mxu0 0.0
    %898 = vmatpush2.msra.mxu0 0.0
    %899 = vmatprep.subr.mxu0 0.0
    %900 = vmatpush2.msra.mxu0 0.0
    %901 = vmatprep.subr.mxu0 0.0
    %902 = vmatpush2.msra.mxu0 0.0
    %903 = vmatprep.subr.mxu0 0.0
    %904 = vmatpush2.msra.mxu0 0.0
    %905 = vmatprep.subr.mxu0 0.0
    %906 = vmatpush2.msra.mxu0 0.0
    %907 = vmatprep.subr.mxu0 0.0
    %908 = vmatpush2.msra.mxu0 0.0
    %909 = vmatprep.subr.mxu0 0.0
    %910 = vmatpush2.msra.mxu0 0.0
    %911 = vmatprep.subr.mxu0 0.0
    %912 = vmatpush2.msra.mxu0 0.0
    %913 = vmatprep.subr.mxu0 0.0
    %914 = vmatpush2.msra.mxu0 0.0
    %915 = vmatprep.subr.mxu0 0.0
    %916 = vmatpush2.msra.mxu0 0.0
    %917 = vmatprep.subr.mxu0 0.0
    %918 = vmatpush2.msra.mxu0 0.0
    %919 = vmatprep.subr.mxu0 0.0
    %920 = vmatpush2.msra.mxu0 0.0
    %921 = vmatprep.subr.mxu0 0.0
    %922 = vmatpush2.msra.mxu0 0.0
    %923 = vmatprep.subr.mxu0 0.0
    %924 = vmatpush2.msra.mxu0 0.0
    %925 = vmatprep.subr.mxu0 0.0
    %926 = vmatpush2.msra.mxu0 0.0
    %927 = vmatprep.subr.mxu0 0.0
    %928 = vmatpush2.msra.mxu0 0.0
    %929 = vmatprep.mubr.f32.mxu0 0.0
    %930 = vmatmul.mubr.f32.gmra.mxu0 %v857
    %v931 = vpop.f32.mrf.mxu0
    %v932 = vadd.f32 %v843, %v931
    %v933 = vpop.f32.mrf.mxu0
    %934 = vmatprep.mubr.f32.mxu0 0.0
    %935 = vmatmul.mubr.f32.gmra.mxu0 %v860
    %v936 = vpop.f32.mrf.mxu0
    %v937 = vadd.f32 %v848, %v936
    %v938 = vpop.f32.mrf.mxu0
    %939 = vmatprep.mubr.f32.mxu0 0.0
    %940 = vmatmul.mubr.f32.gmra.mxu0 %v863
    %v941 = vpop.f32.mrf.mxu0
    %v942 = vadd.f32 %v853, %v941
    %v943 = vpop.f32.mrf.mxu0
    %944 = vdwg.mxu0
    %v946 = vlaneseq
    %v947 = vshrl.u32 %v946, 7
    %v948 = vsub.s32 0, %v947
    %v949 = vrot.slane %v684, %v948
    %v951 = vadd.f32 %v932, %v949
    %v952 = vadd.f32 %v937, %v949
    %v953 = vadd.f32 %v942, %v949
    %vm954 = vcmp.gt.f32.partialorder %v951, 0.0
    %vm955 = vcmp.gt.f32.partialorder %v952, 0.0
    %vm956 = vcmp.gt.f32.partialorder %v953, 0.0
    %v957 = vmul.f32 %v951, 1.442695
    %v958 = vpow.pop %v957
    %v959 = vmul.f32 %v952, 1.442695
    %v960 = vpow.pop %v959
    %v961 = vmul.f32 %v953, 1.442695
    %v962 = vpow.pop %v961
    %v963 = vsub.f32 %v958, 1.0
    %v964 = vsub.f32 %v960, 1.0
    %v965 = vsub.f32 %v962, 1.0
    %v966 = vsel %vm954, %v951, %v963
    %v967 = vsel %vm955, %v952, %v964
    %v968 = vsel %vm956, %v953, %v965
    %v969 = vld [vmem:[%s13] sm:$0xff]
    %v970 = vld [vmem:[%s13 + $0x8] sm:$0xff]
    %v971 = vld [vmem:[%s13 + $0x10] sm:$0xff]
    %v972 = vld [vmem:[%s13 + $0x18] sm:$0xff]
    %v973 = vld [vmem:[%s14] sm:$0xff]
    %v974 = vld [vmem:[%s14 + $0x8] sm:$0xff]
    %v975 = vld [vmem:[%s14 + $0x10] sm:$0xff]
    %v976 = vld [vmem:[%s14 + $0x18] sm:$0xff]
    %977 = vmatprep.subr.mxu0 0.0
    %978 = vmatpush1.msra.mxu0 0.0
    %979 = vmatprep.subr.mxu0 0.0
    %980 = vmatpush1.msra.mxu0 0.0
    %981 = vmatprep.subr.mxu0 0.0
    %982 = vmatpush1.msra.mxu0 0.0
    %983 = vmatprep.subr.mxu0 0.0
    %984 = vmatpush1.msra.mxu0 0.0
    %985 = vmatprep.subr.mxu0 0.0
    %986 = vmatpush1.msra.mxu0 0.0
    %987 = vmatprep.subr.mxu0 0.0
    %988 = vmatpush1.msra.mxu0 0.0
    %989 = vmatprep.subr.mxu0 0.0
    %990 = vmatpush1.msra.mxu0 0.0
    %991 = vmatprep.subr.mxu0 0.0
    %992 = vmatpush1.msra.mxu0 0.0
    %993 = vmatprep.subr.mxu0 0.0
    %994 = vmatpush1.msra.mxu0 0.0
    %995 = vmatprep.subr.mxu0 0.0
    %996 = vmatpush1.msra.mxu0 0.0
    %997 = vmatprep.subr.mxu0 0.0
    %998 = vmatpush1.msra.mxu0 0.0
    %999 = vmatprep.subr.mxu0 0.0
    %1000 = vmatpush1.msra.mxu0 0.0
    %1001 = vmatprep.subr.mxu0 0.0
    %1002 = vmatpush1.msra.mxu0 %v976
    %1003 = vmatprep.subr.mxu0 0.0
    %1004 = vmatpush1.msra.mxu0 %v975
    %1005 = vmatprep.subr.mxu0 0.0
    %1006 = vmatpush1.msra.mxu0 %v974
    %1007 = vmatprep.subr.mxu0 0.0
    %1008 = vmatpush1.msra.mxu0 %v973
    %1009 = vmatprep.subr.mxu0 0.0
    %1010 = vmatpush2.msra.mxu0 0.0
    %1011 = vmatprep.subr.mxu0 0.0
    %1012 = vmatpush2.msra.mxu0 0.0
    %1013 = vmatprep.subr.mxu0 0.0
    %1014 = vmatpush2.msra.mxu0 0.0
    %1015 = vmatprep.subr.mxu0 0.0
    %1016 = vmatpush2.msra.mxu0 0.0
    %1017 = vmatprep.subr.mxu0 0.0
    %1018 = vmatpush2.msra.mxu0 0.0
    %1019 = vmatprep.subr.mxu0 0.0
    %1020 = vmatpush2.msra.mxu0 0.0
    %1021 = vmatprep.subr.mxu0 0.0
    %1022 = vmatpush2.msra.mxu0 0.0
    %1023 = vmatprep.subr.mxu0 0.0
    %1024 = vmatpush2.msra.mxu0 0.0
    %1025 = vmatprep.subr.mxu0 0.0
    %1026 = vmatpush2.msra.mxu0 0.0
    %1027 = vmatprep.subr.mxu0 0.0
    %1028 = vmatpush2.msra.mxu0 0.0
    %1029 = vmatprep.subr.mxu0 0.0
    %1030 = vmatpush2.msra.mxu0 0.0
    %1031 = vmatprep.subr.mxu0 0.0
    %1032 = vmatpush2.msra.mxu0 0.0
    %1033 = vmatprep.subr.mxu0 0.0
    %1034 = vmatpush2.msra.mxu0 0.0
    %1035 = vmatprep.subr.mxu0 0.0
    %1036 = vmatpush2.msra.mxu0 0.0
    %1037 = vmatprep.subr.mxu0 0.0
    %1038 = vmatpush2.msra.mxu0 0.0
    %1039 = vmatprep.subr.mxu0 0.0
    %1040 = vmatpush2.msra.mxu0 0.0
    %1041 = vmatprep.mubr.f32.mxu0 0.0
    %1042 = vmatmul.mubr.f32.gmra.mxu0 %v769
    %v1043 = vpop.f32.mrf.mxu0
    %v1044 = vadd.f32 0.0, %v1043
    %v1045 = vpop.f32.mrf.mxu0
    %1046 = vmatprep.mubr.f32.mxu0 0.0
    %1047 = vmatmul.mubr.f32.gmra.mxu0 %v772
    %v1048 = vpop.f32.mrf.mxu0
    %v1049 = vadd.f32 0.0, %v1048
    %v1050 = vpop.f32.mrf.mxu0
    %1051 = vmatprep.mubr.f32.mxu0 0.0
    %1052 = vmatmul.mubr.f32.gmra.mxu0 %v774
    %v1053 = vpop.f32.mrf.mxu0
    %v1054 = vadd.f32 0.0, %v1053
    %v1055 = vpop.f32.mrf.mxu0
    %1056 = vdwg.mxu0
    %1057 = vmatprep.subr.mxu0 0.0
    %1058 = vmatpush1.msra.mxu0 0.0
    %1059 = vmatprep.subr.mxu0 0.0
    %1060 = vmatpush1.msra.mxu0 0.0
    %1061 = vmatprep.subr.mxu0 0.0
    %1062 = vmatpush1.msra.mxu0 0.0
    %1063 = vmatprep.subr.mxu0 0.0
    %1064 = vmatpush1.msra.mxu0 0.0
    %1065 = vmatprep.subr.mxu0 0.0
    %1066 = vmatpush1.msra.mxu0 0.0
    %1067 = vmatprep.subr.mxu0 0.0
    %1068 = vmatpush1.msra.mxu0 0.0
    %1069 = vmatprep.subr.mxu0 0.0
    %1070 = vmatpush1.msra.mxu0 0.0
    %1071 = vmatprep.subr.mxu0 0.0
    %1072 = vmatpush1.msra.mxu0 0.0
    %1073 = vmatprep.subr.mxu0 0.0
    %1074 = vmatpush1.msra.mxu0 0.0
    %1075 = vmatprep.subr.mxu0 0.0
    %1076 = vmatpush1.msra.mxu0 0.0
    %1077 = vmatprep.subr.mxu0 0.0
    %1078 = vmatpush1.msra.mxu0 0.0
    %1079 = vmatprep.subr.mxu0 0.0
    %1080 = vmatpush1.msra.mxu0 0.0
    %1081 = vmatprep.subr.mxu0 0.0
    %1082 = vmatpush1.msra.mxu0 %v972
    %1083 = vmatprep.subr.mxu0 0.0
    %1084 = vmatpush1.msra.mxu0 %v971
    %1085 = vmatprep.subr.mxu0 0.0
    %1086 = vmatpush1.msra.mxu0 %v970
    %1087 = vmatprep.subr.mxu0 0.0
    %1088 = vmatpush1.msra.mxu0 %v969
    %1089 = vmatprep.subr.mxu0 0.0
    %1090 = vmatpush2.msra.mxu0 0.0
    %1091 = vmatprep.subr.mxu0 0.0
    %1092 = vmatpush2.msra.mxu0 0.0
    %1093 = vmatprep.subr.mxu0 0.0
    %1094 = vmatpush2.msra.mxu0 0.0
    %1095 = vmatprep.subr.mxu0 0.0
    %1096 = vmatpush2.msra.mxu0 0.0
    %1097 = vmatprep.subr.mxu0 0.0
    %1098 = vmatpush2.msra.mxu0 0.0
    %1099 = vmatprep.subr.mxu0 0.0
    %1100 = vmatpush2.msra.mxu0 0.0
    %1101 = vmatprep.subr.mxu0 0.0
    %1102 = vmatpush2.msra.mxu0 0.0
    %1103 = vmatprep.subr.mxu0 0.0
    %1104 = vmatpush2.msra.mxu0 0.0
    %1105 = vmatprep.subr.mxu0 0.0
    %1106 = vmatpush2.msra.mxu0 0.0
    %1107 = vmatprep.subr.mxu0 0.0
    %1108 = vmatpush2.msra.mxu0 0.0
    %1109 = vmatprep.subr.mxu0 0.0
    %1110 = vmatpush2.msra.mxu0 0.0
    %1111 = vmatprep.subr.mxu0 0.0
    %1112 = vmatpush2.msra.mxu0 0.0
    %1113 = vmatprep.subr.mxu0 0.0
    %1114 = vmatpush2.msra.mxu0 0.0
    %1115 = vmatprep.subr.mxu0 0.0
    %1116 = vmatpush2.msra.mxu0 0.0
    %1117 = vmatprep.subr.mxu0 0.0
    %1118 = vmatpush2.msra.mxu0 0.0
    %1119 = vmatprep.subr.mxu0 0.0
    %1120 = vmatpush2.msra.mxu0 0.0
    %1121 = vmatprep.mubr.f32.mxu0 0.0
    %1122 = vmatmul.mubr.f32.gmra.mxu0 %v476
    %v1123 = vpop.f32.mrf.mxu0
    %v1124 = vadd.f32 %v1044, %v1123
    %v1125 = vpop.f32.mrf.mxu0
    %1126 = vmatprep.mubr.f32.mxu0 0.0
    %1127 = vmatmul.mubr.f32.gmra.mxu0 %v479
    %v1128 = vpop.f32.mrf.mxu0
    %v1129 = vadd.f32 %v1049, %v1128
    %v1130 = vpop.f32.mrf.mxu0
    %1131 = vmatprep.mubr.f32.mxu0 0.0
    %1132 = vmatmul.mubr.f32.gmra.mxu0 %v481
    %v1133 = vpop.f32.mrf.mxu0
    %v1134 = vadd.f32 %v1054, %v1133
    %v1135 = vpop.f32.mrf.mxu0
    %1136 = vdwg.mxu0
    %v1137 = vld [vmem:[%s15] sm:$0x1]
    %1139 = vset.pattern.permute.xlu0 0
    %1140 = vperm.xlu0 %1139, %v966
    %v1141 = vpop.permute.xlu0 %1140
    %1144 = vset.pattern.permute.xlu0 0
    %1145 = vperm.xlu0 %1144, %v967
    %v1146 = vpop.permute.xlu0 %1145
    %1149 = vset.pattern.permute.xlu0 0
    %1150 = vperm.xlu0 %1149, %v968
    %v1151 = vpop.permute.xlu0 %1150
    %v1154 = vlaneseq
    %v1155 = vshrl.u32 %v1154, 7
    %v1156 = vsub.s32 0, %v1155
    %v1157 = vrot.slane %v1137, %v1156
    %v1159 = vmul.f32 %v1141, %v1157
    %v1160 = vmul.f32 %v1146, %v1157
    %v1161 = vmul.f32 %v1151, %v1157
    %v1162 = vadd.f32 %v1124, %v1159
    %v1163 = vadd.f32 %v1129, %v1160
    %v1164 = vadd.f32 %v1134, %v1161
    %vm1165 = vcmask 7168
    %v1167 = vsel %vm1165, 1.0, 0
    %v1169 = vsel %vm1165, %v966, 0
    %v1171 = vsel %vm1165, %v967, 0
    %v1173 = vsel %vm1165, %v968, 0
    %1175 = vmatprep.subr.mxu0 0.0
    %1176 = vmatpush1.xpose.msra.mxu0 0.0
    %1177 = vmatprep.subr.mxu0 0.0
    %1178 = vmatpush1.xpose.msra.mxu0 0.0
    %1179 = vmatprep.subr.mxu0 0.0
    %1180 = vmatpush1.xpose.msra.mxu0 0.0
    %1181 = vmatprep.subr.mxu0 0.0
    %1182 = vmatpush1.xpose.msra.mxu0 0.0
    %1183 = vmatprep.subr.mxu0 0.0
    %1184 = vmatpush1.xpose.msra.mxu0 0.0
    %1185 = vmatprep.subr.mxu0 0.0
    %1186 = vmatpush1.xpose.msra.mxu0 0.0
    %1187 = vmatprep.subr.mxu0 0.0
    %1188 = vmatpush1.xpose.msra.mxu0 0.0
    %1189 = vmatprep.subr.mxu0 0.0
    %1190 = vmatpush1.xpose.msra.mxu0 0.0
    %1191 = vmatprep.subr.mxu0 0.0
    %1192 = vmatpush1.xpose.msra.mxu0 0.0
    %1193 = vmatprep.subr.mxu0 0.0
    %1194 = vmatpush1.xpose.msra.mxu0 0.0
    %1195 = vmatprep.subr.mxu0 0.0
    %1196 = vmatpush1.xpose.msra.mxu0 0.0
    %1197 = vmatprep.subr.mxu0 0.0
    %1198 = vmatpush1.xpose.msra.mxu0 0.0
    %1199 = vmatprep.subr.mxu0 0.0
    %1200 = vmatpush1.xpose.msra.mxu0 0.0
    %1201 = vmatprep.subr.mxu0 0.0
    %1202 = vmatpush1.xpose.msra.mxu0 %v1173
    %1203 = vmatprep.subr.mxu0 0.0
    %1204 = vmatpush1.xpose.msra.mxu0 %v1171
    %1205 = vmatprep.subr.mxu0 0.0
    %1206 = vmatpush1.xpose.msra.mxu0 %v1169
    %1207 = vmatprep.subr.mxu0 0.0
    %1208 = vmatpush2.xpose.msra.mxu0 0.0
    %1209 = vmatprep.subr.mxu0 0.0
    %1210 = vmatpush2.xpose.msra.mxu0 0.0
    %1211 = vmatprep.subr.mxu0 0.0
    %1212 = vmatpush2.xpose.msra.mxu0 0.0
    %1213 = vmatprep.subr.mxu0 0.0
    %1214 = vmatpush2.xpose.msra.mxu0 0.0
    %1215 = vmatprep.subr.mxu0 0.0
    %1216 = vmatpush2.xpose.msra.mxu0 0.0
    %1217 = vmatprep.subr.mxu0 0.0
    %1218 = vmatpush2.xpose.msra.mxu0 0.0
    %1219 = vmatprep.subr.mxu0 0.0
    %1220 = vmatpush2.xpose.msra.mxu0 0.0
    %1221 = vmatprep.subr.mxu0 0.0
    %1222 = vmatpush2.xpose.msra.mxu0 0.0
    %1223 = vmatprep.subr.mxu0 0.0
    %1224 = vmatpush2.xpose.msra.mxu0 0.0
    %1225 = vmatprep.subr.mxu0 0.0
    %1226 = vmatpush2.xpose.msra.mxu0 0.0
    %1227 = vmatprep.subr.mxu0 0.0
    %1228 = vmatpush2.xpose.msra.mxu0 0.0
    %1229 = vmatprep.subr.mxu0 0.0
    %1230 = vmatpush2.xpose.msra.mxu0 0.0
    %1231 = vmatprep.subr.mxu0 0.0
    %1232 = vmatpush2.xpose.msra.mxu0 0.0
    %1233 = vmatprep.subr.mxu0 0.0
    %1234 = vmatpush2.xpose.msra.mxu0 0.0
    %1235 = vmatprep.subr.mxu0 0.0
    %1236 = vmatpush2.xpose.msra.mxu0 0.0
    %1237 = vmatprep.subr.mxu0 0.0
    %1238 = vmatpush2.xpose.msra.mxu0 0.0
    %1239 = vmatprep.mubr.f32.mxu0 0.0
    %1240 = vmatmul.mubr.f32.gmra.mxu0 %v1167
    %v1241 = vpop.f32.mrf.mxu0
    %v1242 = vadd.f32 0.0, %v1241
    %v1243 = vpop.f32.mrf.mxu0
    %1244 = vmatprep.mubr.f32.mxu0 0.0
    %1245 = vmatmul.mubr.f32.gmra.mxu0 %v1167
    %v1246 = vpop.f32.mrf.mxu0
    %v1247 = vadd.f32 0.0, %v1246
    %v1248 = vpop.f32.mrf.mxu0
    %1249 = vmatprep.mubr.f32.mxu0 0.0
    %1250 = vmatmul.mubr.f32.gmra.mxu0 %v1167
    %v1251 = vpop.f32.mrf.mxu0
    %v1252 = vadd.f32 0.0, %v1251
    %v1253 = vpop.f32.mrf.mxu0
    %1254 = vdwg.mxu0
    %v1255 = vlaneseq
    %v1256 = vshrl.u32 %v1255, 7
    %v1257 = vadd.s32 %v1256, 8
    %v1258 = vadd.s32 %v1256, 16
    %v1259 = vlaneseq
    %v1260 = vand.u32 %v1259, 127
    %v1261 = vld [vmem:[%s2] sm:$0x1]
    %v1262 = vld [vmem:[%s3] sm:$0xff]
    %v1263 = vld [vmem:[%s3 + $0x8] sm:$0xff]
    %v1264 = vld [vmem:[%s3 + $0x10] sm:$0xf]
    %1265 = vset.pattern.permute.xlu0 0
    %1266 = vperm.xlu0 %1265, %v1262
    %v1267 = vpop.permute.xlu0 %1266
    %1268 = vset.pattern.permute.xlu0 0
    %1269 = vperm.xlu0 %1268, %v1263
    %v1270 = vpop.permute.xlu0 %1269
    %1271 = vset.pattern.permute.xlu0 0
    %1272 = vperm.xlu0 %1271, %v1264
    %v1273 = vpop.permute.xlu0 %1272
    %v1274 = vlaneseq
    %v1275 = vshrl.u32 %v1274, 7
    %v1276 = vsub.s32 0, %v1275
    %v1277 = vrot.slane %v1261, %v1276
    %vm1278 = vcmp.eq.s32.totalorder %v1267, %v1277
    %vm1279 = vcmp.eq.s32.totalorder %v1270, %v1277
    %vm1280 = vcmp.eq.s32.totalorder %v1273, %v1277
    %vm1281 = vcmp.gt.f32.partialorder %v1141, %v1242
    %vm1282 = vcmp.gt.f32.partialorder %v1146, %v1247
    %vm1283 = vcmp.gt.f32.partialorder %v1151, %v1252
    %vm1284 = vcmp.eq.f32.partialorder %v1141, %v1242
    %vm1285 = vcmp.eq.f32.partialorder %v1146, %v1247
    %vm1286 = vcmp.eq.f32.partialorder %v1151, %v1252
    %vm1287 = vcmp.lt.s32.totalorder %v1256, %v1260
    %vm1288 = vcmp.lt.s32.totalorder %v1257, %v1260
    %vm1289 = vcmp.lt.s32.totalorder %v1258, %v1260
    %vm1290 = vmand %vm1284, %vm1287
    %vm1291 = vmand %vm1285, %vm1288
    %vm1292 = vmand %vm1286, %vm1289
    %vm1293 = vmor %vm1281, %vm1290
    %vm1294 = vmor %vm1282, %vm1291
    %vm1295 = vmor %vm1283, %vm1292
    %vm1296 = vmand %vm1278, %vm1293
    %vm1297 = vmand %vm1279, %vm1294
    %vm1298 = vmand %vm1280, %vm1295
    %v1299 = vsel %vm1296, 1.0, 0.0
    %v1300 = vsel %vm1297, 1.0, 0.0
    %v1301 = vsel %vm1298, 1.0, 0.0
    %v1302 = vsel %vm86, %v1299, 0.0
    %v1303 = vsel %vm86, %v1300, 0.0
    %v1304 = vadd.f32 %v1302, %v1303
    %vm1305 = vcmask 158720
    %v1306 = vsel %vm1305, %v1301, 0.0
    %v1307 = vadd.f32 %v1304, %v1306
    %v1308 = vrot.slane %v1307, 4
    %v1309 = vadd.f32 %v1307, %v1308
    %v1310 = vrot.slane %v1309, 2
    %v1311 = vadd.f32 %v1309, %v1310
    %v1312 = vrot.slane %v1311, 1
    %v1313 = vadd.f32 %v1311, %v1312
    %v1314 = vcvt.s32.f32 %v1256
    %v1315 = vmul.f32 %v1314, 2.0
    %v1317 = vrot.slane %v1315, 2
    %vm1319 = vcmask 1045504
    %v1320 = vsel %vm1319, %v1315, %v1317
    %v1321 = vsel %vm1319, 0, 1
    %vm1322 = vcmp.eq.s32.totalorder %v1321, %v1277
    %vm1323 = vcmp.eq.s32.totalorder %v1277, 1
    %vm1324 = vcmp.eq.f32.partialorder %v1320, %v1313
    %vm1325 = vcmp.eq.f32.partialorder %v1317, %v1313
    %vm1326 = vmand %vm1324, %vm1322
    %vm1327 = vmand %vm1325, %vm1323
    %v1328 = vsel %vm1326, 1.0, 0.0
    %v1329 = vsel %vm1327, 1.0, 0.0
    %v1330 = vadd.f32 %v1320, 1.0
    %v1331 = vadd.f32 %v1317, 1.0
    %vm1332 = vcmp.eq.f32.partialorder %v1330, %v1313
    %vm1333 = vcmp.eq.f32.partialorder %v1331, %v1313
    %vm1334 = vmand %vm1332, %vm1322
    %vm1335 = vmand %vm1333, %vm1323
    %v1336 = vsel %vm1334, 1.0, 0.0
    %v1337 = vsel %vm1335, 1.0, 0.0
    %v1338 = vld [vmem:[%s16] sm:$0x1]
    %v1340 = vlaneseq
    %v1341 = vshrl.u32 %v1340, 7
    %v1342 = vsub.s32 0, %v1341
    %v1343 = vrot.slane %v1338, %v1342
    %v1346 = vsel %vm86, %v1328, 0
    %v1349 = vsel %vm86, %v1329, 0
    %v1352 = vsel %vm96, %v1164, 0
    %1354 = vmatprep.subr.mxu0 0.0
    %1355 = vmatpush1.msra.mxu0 0.0
    %1356 = vmatprep.subr.mxu0 0.0
    %1357 = vmatpush1.msra.mxu0 0.0
    %1358 = vmatprep.subr.mxu0 0.0
    %1359 = vmatpush1.msra.mxu0 0.0
    %1360 = vmatprep.subr.mxu0 0.0
    %1361 = vmatpush1.msra.mxu0 0.0
    %1362 = vmatprep.subr.mxu0 0.0
    %1363 = vmatpush1.msra.mxu0 0.0
    %1364 = vmatprep.subr.mxu0 0.0
    %1365 = vmatpush1.msra.mxu0 0.0
    %1366 = vmatprep.subr.mxu0 0.0
    %1367 = vmatpush1.msra.mxu0 0.0
    %1368 = vmatprep.subr.mxu0 0.0
    %1369 = vmatpush1.msra.mxu0 0.0
    %1370 = vmatprep.subr.mxu0 0.0
    %1371 = vmatpush1.msra.mxu0 0.0
    %1372 = vmatprep.subr.mxu0 0.0
    %1373 = vmatpush1.msra.mxu0 0.0
    %1374 = vmatprep.subr.mxu0 0.0
    %1375 = vmatpush1.msra.mxu0 0.0
    %1376 = vmatprep.subr.mxu0 0.0
    %1377 = vmatpush1.msra.mxu0 0.0
    %1378 = vmatprep.subr.mxu0 0.0
    %1379 = vmatpush1.msra.mxu0 0.0
    %1380 = vmatprep.subr.mxu0 0.0
    %1381 = vmatpush1.msra.mxu0 %v1352
    %1382 = vmatprep.subr.mxu0 0.0
    %1383 = vmatpush1.msra.mxu0 %v1163
    %1384 = vmatprep.subr.mxu0 0.0
    %1385 = vmatpush1.msra.mxu0 %v1162
    %1386 = vmatprep.subr.mxu0 0.0
    %1387 = vmatpush2.msra.mxu0 0.0
    %1388 = vmatprep.subr.mxu0 0.0
    %1389 = vmatpush2.msra.mxu0 0.0
    %1390 = vmatprep.subr.mxu0 0.0
    %1391 = vmatpush2.msra.mxu0 0.0
    %1392 = vmatprep.subr.mxu0 0.0
    %1393 = vmatpush2.msra.mxu0 0.0
    %1394 = vmatprep.subr.mxu0 0.0
    %1395 = vmatpush2.msra.mxu0 0.0
    %1396 = vmatprep.subr.mxu0 0.0
    %1397 = vmatpush2.msra.mxu0 0.0
    %1398 = vmatprep.subr.mxu0 0.0
    %1399 = vmatpush2.msra.mxu0 0.0
    %1400 = vmatprep.subr.mxu0 0.0
    %1401 = vmatpush2.msra.mxu0 0.0
    %1402 = vmatprep.subr.mxu0 0.0
    %1403 = vmatpush2.msra.mxu0 0.0
    %1404 = vmatprep.subr.mxu0 0.0
    %1405 = vmatpush2.msra.mxu0 0.0
    %1406 = vmatprep.subr.mxu0 0.0
    %1407 = vmatpush2.msra.mxu0 0.0
    %1408 = vmatprep.subr.mxu0 0.0
    %1409 = vmatpush2.msra.mxu0 0.0
    %1410 = vmatprep.subr.mxu0 0.0
    %1411 = vmatpush2.msra.mxu0 0.0
    %1412 = vmatprep.subr.mxu0 0.0
    %1413 = vmatpush2.msra.mxu0 0.0
    %1414 = vmatprep.subr.mxu0 0.0
    %1415 = vmatpush2.msra.mxu0 0.0
    %1416 = vmatprep.subr.mxu0 0.0
    %1417 = vmatpush2.msra.mxu0 0.0
    %1418 = vmatprep.mubr.f32.mxu0 0.0
    %1419 = vmatmul.mubr.f32.gmra.mxu0 %v1346
    %v1420 = vpop.f32.mrf.mxu0
    %v1421 = vadd.f32 %v1343, %v1420
    %v1422 = vpop.f32.mrf.mxu0
    %1423 = vmatprep.mubr.f32.mxu0 0.0
    %1424 = vmatmul.mubr.f32.gmra.mxu0 %v1349
    %v1425 = vpop.f32.mrf.mxu0
    %v1426 = vadd.f32 %v1343, %v1425
    %v1427 = vpop.f32.mrf.mxu0
    %1428 = vdwg.mxu0
    %vm1429 = vcmp.gt.f32.partialorder %v1421, 0.0
    %vm1430 = vcmp.gt.f32.partialorder %v1426, 0.0
    %v1431 = vmul.f32 %v1421, 1.442695
    %v1432 = vpow.pop %v1431
    %v1433 = vmul.f32 %v1426, 1.442695
    %v1434 = vpow.pop %v1433
    %v1435 = vsub.f32 %v1432, 1.0
    %v1436 = vsub.f32 %v1434, 1.0
    %v1437 = vsel %vm1429, %v1421, %v1435
    %v1438 = vsel %vm1430, %v1426, %v1436
    %v1440 = vsel %vm86, %v1336, 0
    %v1443 = vsel %vm86, %v1337, 0
    %1445 = vmatprep.subr.mxu0 0.0
    %1446 = vmatpush1.msra.mxu0 0.0
    %1447 = vmatprep.subr.mxu0 0.0
    %1448 = vmatpush1.msra.mxu0 0.0
    %1449 = vmatprep.subr.mxu0 0.0
    %1450 = vmatpush1.msra.mxu0 0.0
    %1451 = vmatprep.subr.mxu0 0.0
    %1452 = vmatpush1.msra.mxu0 0.0
    %1453 = vmatprep.subr.mxu0 0.0
    %1454 = vmatpush1.msra.mxu0 0.0
    %1455 = vmatprep.subr.mxu0 0.0
    %1456 = vmatpush1.msra.mxu0 0.0
    %1457 = vmatprep.subr.mxu0 0.0
    %1458 = vmatpush1.msra.mxu0 0.0
    %1459 = vmatprep.subr.mxu0 0.0
    %1460 = vmatpush1.msra.mxu0 0.0
    %1461 = vmatprep.subr.mxu0 0.0
    %1462 = vmatpush1.msra.mxu0 0.0
    %1463 = vmatprep.subr.mxu0 0.0
    %1464 = vmatpush1.msra.mxu0 0.0
    %1465 = vmatprep.subr.mxu0 0.0
    %1466 = vmatpush1.msra.mxu0 0.0
    %1467 = vmatprep.subr.mxu0 0.0
    %1468 = vmatpush1.msra.mxu0 0.0
    %1469 = vmatprep.subr.mxu0 0.0
    %1470 = vmatpush1.msra.mxu0 0.0
    %1471 = vmatprep.subr.mxu0 0.0
    %1472 = vmatpush1.msra.mxu0 %v1352
    %1473 = vmatprep.subr.mxu0 0.0
    %1474 = vmatpush1.msra.mxu0 %v1163
    %1475 = vmatprep.subr.mxu0 0.0
    %1476 = vmatpush1.msra.mxu0 %v1162
    %1477 = vmatprep.subr.mxu0 0.0
    %1478 = vmatpush2.msra.mxu0 0.0
    %1479 = vmatprep.subr.mxu0 0.0
    %1480 = vmatpush2.msra.mxu0 0.0
    %1481 = vmatprep.subr.mxu0 0.0
    %1482 = vmatpush2.msra.mxu0 0.0
    %1483 = vmatprep.subr.mxu0 0.0
    %1484 = vmatpush2.msra.mxu0 0.0
    %1485 = vmatprep.subr.mxu0 0.0
    %1486 = vmatpush2.msra.mxu0 0.0
    %1487 = vmatprep.subr.mxu0 0.0
    %1488 = vmatpush2.msra.mxu0 0.0
    %1489 = vmatprep.subr.mxu0 0.0
    %1490 = vmatpush2.msra.mxu0 0.0
    %1491 = vmatprep.subr.mxu0 0.0
    %1492 = vmatpush2.msra.mxu0 0.0
    %1493 = vmatprep.subr.mxu0 0.0
    %1494 = vmatpush2.msra.mxu0 0.0
    %1495 = vmatprep.subr.mxu0 0.0
    %1496 = vmatpush2.msra.mxu0 0.0
    %1497 = vmatprep.subr.mxu0 0.0
    %1498 = vmatpush2.msra.mxu0 0.0
    %1499 = vmatprep.subr.mxu0 0.0
    %1500 = vmatpush2.msra.mxu0 0.0
    %1501 = vmatprep.subr.mxu0 0.0
    %1502 = vmatpush2.msra.mxu0 0.0
    %1503 = vmatprep.subr.mxu0 0.0
    %1504 = vmatpush2.msra.mxu0 0.0
    %1505 = vmatprep.subr.mxu0 0.0
    %1506 = vmatpush2.msra.mxu0 0.0
    %1507 = vmatprep.subr.mxu0 0.0
    %1508 = vmatpush2.msra.mxu0 0.0
    %1509 = vmatprep.mubr.f32.mxu0 0.0
    %1510 = vmatmul.mubr.f32.gmra.mxu0 %v1440
    %v1511 = vpop.f32.mrf.mxu0
    %v1512 = vadd.f32 %v1343, %v1511
    %v1513 = vpop.f32.mrf.mxu0
    %1514 = vmatprep.mubr.f32.mxu0 0.0
    %1515 = vmatmul.mubr.f32.gmra.mxu0 %v1443
    %v1516 = vpop.f32.mrf.mxu0
    %v1517 = vadd.f32 %v1343, %v1516
    %v1518 = vpop.f32.mrf.mxu0
    %1519 = vdwg.mxu0
    %vm1520 = vcmp.gt.f32.partialorder %v1512, 0.0
    %vm1521 = vcmp.gt.f32.partialorder %v1517, 0.0
    %v1522 = vmul.f32 %v1512, 1.442695
    %v1523 = vpow.pop %v1522
    %v1524 = vmul.f32 %v1517, 1.442695
    %v1525 = vpow.pop %v1524
    %v1526 = vsub.f32 %v1523, 1.0
    %v1527 = vsub.f32 %v1525, 1.0
    %v1528 = vsel %vm1520, %v1512, %v1526
    %v1529 = vsel %vm1521, %v1517, %v1527
    %v1530 = vmax.f32 %v1437, %v1528
    %v1531 = vmax.f32 %v1438, %v1529
    %v1533 = vrot.slane %v1530, 1
    %1534 = vrot.lane.b32.xlu0 %v1533, 16
    %v1535 = vpop.permute.xlu0 %1534
    %v1537 = vrot.slane %v1530, 2
    %1538 = vrot.lane.b32.xlu0 %v1537, 32
    %v1539 = vpop.permute.xlu0 %1538
    %v1541 = vrot.slane %v1530, 3
    %1542 = vrot.lane.b32.xlu0 %v1541, 48
    %v1543 = vpop.permute.xlu0 %1542
    %v1545 = vrot.slane %v1530, 4
    %1546 = vrot.lane.b32.xlu0 %v1545, 64
    %v1547 = vpop.permute.xlu0 %1546
    %vm1549 = vcmask 130048
    %v1550 = vsel %vm1549, %v1530, %v1535
    %v1551 = vsel %vm474, %v1550, %v1539
    %vm1552 = vcmask 392192
    %v1553 = vsel %vm1552, %v1551, %v1543
    %vm1554 = vcmask 523264
    %v1555 = vsel %vm1554, %v1553, %v1547
    %vm1557 = vcmask 1046528
    %v1558 = vrot.slane %v1531, 1
    %v1559 = vsel %vm1557, %v1533, %v1558
    %1560 = vrot.lane.b32.xlu0 %v1559, 16
    %v1561 = vpop.permute.xlu0 %1560
    %v1563 = vrot.slane %v1531, 2
    %1564 = vrot.lane.b32.xlu0 %v1563, 32
    %v1565 = vpop.permute.xlu0 %1564
    %v1567 = vrot.slane %v1531, 3
    %1568 = vrot.lane.b32.xlu0 %v1567, 48
    %v1569 = vpop.permute.xlu0 %1568
    %v1571 = vrot.slane %v1531, 4
    %1572 = vrot.lane.b32.xlu0 %v1571, 64
    %v1573 = vpop.permute.xlu0 %1572
    %v1575 = vsel %vm1549, %v1530, %v1561
    %v1576 = vsel %vm474, %v1575, %v1565
    %v1577 = vsel %vm1552, %v1576, %v1569
    %v1578 = vsel %vm1554, %v1577, %v1573
    %v1580 = vrot.slane %v1578, 4
    %vm1582 = vcmask 1041408
    %v1583 = vsel %vm1582, %v1555, %v1580
    %v1584 = vld [vmem:[%s17] sm:$0xff]
    %v1585 = vld [vmem:[%s17 + $0x8] sm:$0xff]
    %v1586 = vld [vmem:[%s17 + $0x10] sm:$0xff]
    %v1587 = vld [vmem:[%s17 + $0x18] sm:$0xff]
    %v1588 = vld [vmem:[%s17 + $0x20] sm:$0xff]
    %v1589 = vld [vmem:[%s17 + $0x28] sm:$0xff]
    %v1590 = vld [vmem:[%s17 + $0x30] sm:$0xff]
    %v1591 = vld [vmem:[%s17 + $0x38] sm:$0xff]
    %v1592 = vld [vmem:[%s17 + $0x40] sm:$0xff]
    %v1593 = vld [vmem:[%s17 + $0x48] sm:$0xff]
    %v1594 = vld [vmem:[%s18] sm:$0x1]
    %v1596 = vlaneseq
    %v1597 = vshrl.u32 %v1596, 7
    %v1598 = vsub.s32 0, %v1597
    %v1599 = vrot.slane %v1594, %v1598
    %vm1601 = vcmask 654336
    %v1603 = vsel %vm1601, %v1583, 0
    %1605 = vmatprep.subr.mxu0 0.0
    %1606 = vmatpush1.msra.mxu0 0.0
    %1607 = vmatprep.subr.mxu0 0.0
    %1608 = vmatpush1.msra.mxu0 0.0
    %1609 = vmatprep.subr.mxu0 0.0
    %1610 = vmatpush1.msra.mxu0 0.0
    %1611 = vmatprep.subr.mxu0 0.0
    %1612 = vmatpush1.msra.mxu0 0.0
    %1613 = vmatprep.subr.mxu0 0.0
    %1614 = vmatpush1.msra.mxu0 0.0
    %1615 = vmatprep.subr.mxu0 0.0
    %1616 = vmatpush1.msra.mxu0 0.0
    %1617 = vmatprep.subr.mxu0 0.0
    %1618 = vmatpush1.msra.mxu0 %v1593
    %1619 = vmatprep.subr.mxu0 0.0
    %1620 = vmatpush1.msra.mxu0 %v1592
    %1621 = vmatprep.subr.mxu0 0.0
    %1622 = vmatpush1.msra.mxu0 %v1591
    %1623 = vmatprep.subr.mxu0 0.0
    %1624 = vmatpush1.msra.mxu0 %v1590
    %1625 = vmatprep.subr.mxu0 0.0
    %1626 = vmatpush1.msra.mxu0 %v1589
    %1627 = vmatprep.subr.mxu0 0.0
    %1628 = vmatpush1.msra.mxu0 %v1588
    %1629 = vmatprep.subr.mxu0 0.0
    %1630 = vmatpush1.msra.mxu0 %v1587
    %1631 = vmatprep.subr.mxu0 0.0
    %1632 = vmatpush1.msra.mxu0 %v1586
    %1633 = vmatprep.subr.mxu0 0.0
    %1634 = vmatpush1.msra.mxu0 %v1585
    %1635 = vmatprep.subr.mxu0 0.0
    %1636 = vmatpush1.msra.mxu0 %v1584
    %1637 = vmatprep.subr.mxu0 0.0
    %1638 = vmatpush2.msra.mxu0 0.0
    %1639 = vmatprep.subr.mxu0 0.0
    %1640 = vmatpush2.msra.mxu0 0.0
    %1641 = vmatprep.subr.mxu0 0.0
    %1642 = vmatpush2.msra.mxu0 0.0
    %1643 = vmatprep.subr.mxu0 0.0
    %1644 = vmatpush2.msra.mxu0 0.0
    %1645 = vmatprep.subr.mxu0 0.0
    %1646 = vmatpush2.msra.mxu0 0.0
    %1647 = vmatprep.subr.mxu0 0.0
    %1648 = vmatpush2.msra.mxu0 0.0
    %1649 = vmatprep.subr.mxu0 0.0
    %1650 = vmatpush2.msra.mxu0 0.0
    %1651 = vmatprep.subr.mxu0 0.0
    %1652 = vmatpush2.msra.mxu0 0.0
    %1653 = vmatprep.subr.mxu0 0.0
    %1654 = vmatpush2.msra.mxu0 0.0
    %1655 = vmatprep.subr.mxu0 0.0
    %1656 = vmatpush2.msra.mxu0 0.0
    %1657 = vmatprep.subr.mxu0 0.0
    %1658 = vmatpush2.msra.mxu0 0.0
    %1659 = vmatprep.subr.mxu0 0.0
    %1660 = vmatpush2.msra.mxu0 0.0
    %1661 = vmatprep.subr.mxu0 0.0
    %1662 = vmatpush2.msra.mxu0 0.0
    %1663 = vmatprep.subr.mxu0 0.0
    %1664 = vmatpush2.msra.mxu0 0.0
    %1665 = vmatprep.subr.mxu0 0.0
    %1666 = vmatpush2.msra.mxu0 0.0
    %1667 = vmatprep.subr.mxu0 0.0
    %1668 = vmatpush2.msra.mxu0 0.0
    %1669 = vmatprep.mubr.f32.mxu0 0.0
    %1670 = vmatmul.mubr.f32.gmra.mxu0 %v1603
    %v1671 = vpop.f32.mrf.mxu0
    %v1672 = vadd.f32 %v1599, %v1671
    %v1673 = vpop.f32.mrf.mxu0
    %1674 = vdwg.mxu0
    %vm1675 = vcmp.gt.f32.partialorder %v1672, 0.0
    %v1676 = vmul.f32 %v1672, 1.442695
    %v1677 = vpow.pop %v1676
    %v1678 = vsub.f32 %v1677, 1.0
    %v1679 = vsel %vm1675, %v1672, %v1678
    %v1681 = vrot.slane %v1679, 1
    %1682 = vrot.lane.b32.xlu0 %v1681, 32
    %v1683 = vpop.permute.xlu0 %1682
    %v1685 = vsel %vm474, %v1679, %v1683
    %v1687 = vrot.slane %v1685, 1
    %vm1689 = vcmask 1040384
    %v1690 = vsel %vm1689, %v1685, %v1687
    %v1691 = vld [vmem:[%s19] sm:$0xff]
    %v1692 = vld [vmem:[%s19 + $0x8] sm:$0xff]
    %v1693 = vld [vmem:[%s19 + $0x10] sm:$0xff]
    %v1694 = vld [vmem:[%s19 + $0x18] sm:$0xff]
    %v1695 = vld [vmem:[%s19 + $0x20] sm:$0xff]
    %v1696 = vld [vmem:[%s19 + $0x28] sm:$0xff]
    %v1697 = vld [vmem:[%s19 + $0x30] sm:$0xff]
    %v1698 = vld [vmem:[%s19 + $0x38] sm:$0xff]
    %v1699 = vld [vmem:[%s20] sm:$0x1]
    %v1701 = vlaneseq
    %v1702 = vshrl.u32 %v1701, 7
    %v1703 = vsub.s32 0, %v1702
    %v1704 = vrot.slane %v1699, %v1703
    %v1707 = vsel %vm1554, %v1690, 0
    %1709 = vmatprep.subr.mxu0 0.0
    %1710 = vmatpush1.msra.mxu0 0.0
    %1711 = vmatprep.subr.mxu0 0.0
    %1712 = vmatpush1.msra.mxu0 0.0
    %1713 = vmatprep.subr.mxu0 0.0
    %1714 = vmatpush1.msra.mxu0 0.0
    %1715 = vmatprep.subr.mxu0 0.0
    %1716 = vmatpush1.msra.mxu0 0.0
    %1717 = vmatprep.subr.mxu0 0.0
    %1718 = vmatpush1.msra.mxu0 0.0
    %1719 = vmatprep.subr.mxu0 0.0
    %1720 = vmatpush1.msra.mxu0 0.0
    %1721 = vmatprep.subr.mxu0 0.0
    %1722 = vmatpush1.msra.mxu0 0.0
    %1723 = vmatprep.subr.mxu0 0.0
    %1724 = vmatpush1.msra.mxu0 0.0
    %1725 = vmatprep.subr.mxu0 0.0
    %1726 = vmatpush1.msra.mxu0 %v1698
    %1727 = vmatprep.subr.mxu0 0.0
    %1728 = vmatpush1.msra.mxu0 %v1697
    %1729 = vmatprep.subr.mxu0 0.0
    %1730 = vmatpush1.msra.mxu0 %v1696
    %1731 = vmatprep.subr.mxu0 0.0
    %1732 = vmatpush1.msra.mxu0 %v1695
    %1733 = vmatprep.subr.mxu0 0.0
    %1734 = vmatpush1.msra.mxu0 %v1694
    %1735 = vmatprep.subr.mxu0 0.0
    %1736 = vmatpush1.msra.mxu0 %v1693
    %1737 = vmatprep.subr.mxu0 0.0
    %1738 = vmatpush1.msra.mxu0 %v1692
    %1739 = vmatprep.subr.mxu0 0.0
    %1740 = vmatpush1.msra.mxu0 %v1691
    %1741 = vmatprep.subr.mxu0 0.0
    %1742 = vmatpush2.msra.mxu0 0.0
    %1743 = vmatprep.subr.mxu0 0.0
    %1744 = vmatpush2.msra.mxu0 0.0
    %1745 = vmatprep.subr.mxu0 0.0
    %1746 = vmatpush2.msra.mxu0 0.0
    %1747 = vmatprep.subr.mxu0 0.0
    %1748 = vmatpush2.msra.mxu0 0.0
    %1749 = vmatprep.subr.mxu0 0.0
    %1750 = vmatpush2.msra.mxu0 0.0
    %1751 = vmatprep.subr.mxu0 0.0
    %1752 = vmatpush2.msra.mxu0 0.0
    %1753 = vmatprep.subr.mxu0 0.0
    %1754 = vmatpush2.msra.mxu0 0.0
    %1755 = vmatprep.subr.mxu0 0.0
    %1756 = vmatpush2.msra.mxu0 0.0
    %1757 = vmatprep.subr.mxu0 0.0
    %1758 = vmatpush2.msra.mxu0 0.0
    %1759 = vmatprep.subr.mxu0 0.0
    %1760 = vmatpush2.msra.mxu0 0.0
    %1761 = vmatprep.subr.mxu0 0.0
    %1762 = vmatpush2.msra.mxu0 0.0
    %1763 = vmatprep.subr.mxu0 0.0
    %1764 = vmatpush2.msra.mxu0 0.0
    %1765 = vmatprep.subr.mxu0 0.0
    %1766 = vmatpush2.msra.mxu0 0.0
    %1767 = vmatprep.subr.mxu0 0.0
    %1768 = vmatpush2.msra.mxu0 0.0
    %1769 = vmatprep.subr.mxu0 0.0
    %1770 = vmatpush2.msra.mxu0 0.0
    %1771 = vmatprep.subr.mxu0 0.0
    %1772 = vmatpush2.msra.mxu0 0.0
    %1773 = vmatprep.mubr.f32.mxu0 0.0
    %1774 = vmatmul.mubr.f32.gmra.mxu0 %v1707
    %v1775 = vpop.f32.mrf.mxu0
    %v1776 = vadd.f32 %v1704, %v1775
    %v1777 = vpop.f32.mrf.mxu0
    %1778 = vdwg.mxu0
    %vm1779 = vcmp.gt.f32.partialorder %v1776, 0.0
    %v1780 = vmul.f32 %v1776, 1.442695
    %v1781 = vpow.pop %v1780
    %v1782 = vsub.f32 %v1781, 1.0
    %v1783 = vsel %vm1779, %v1776, %v1782
    %v1784 = vld [vmem:[%s21] sm:$0xff]
    %v1785 = vld [vmem:[%s21 + $0x8] sm:$0xff]
    %v1786 = vld [vmem:[%s21 + $0x10] sm:$0xff]
    %v1787 = vld [vmem:[%s21 + $0x18] sm:$0xff]
    %v1788 = vld [vmem:[%s21 + $0x20] sm:$0xff]
    %v1789 = vld [vmem:[%s21 + $0x28] sm:$0xff]
    %v1790 = vld [vmem:[%s21 + $0x30] sm:$0xff]
    %v1791 = vld [vmem:[%s21 + $0x38] sm:$0xff]
    %v1792 = vld [vmem:[%s21 + $0x40] sm:$0xff]
    %v1793 = vld [vmem:[%s21 + $0x48] sm:$0xff]
    %v1794 = vld [vmem:[%s21 + $0x50] sm:$0xff]
    %v1795 = vld [vmem:[%s21 + $0x58] sm:$0xff]
    %v1796 = vld [vmem:[%s21 + $0x60] sm:$0xff]
    %v1797 = vld [vmem:[%s21 + $0x68] sm:$0xff]
    %v1798 = vld [vmem:[%s21 + $0x70] sm:$0xff]
    %v1799 = vld [vmem:[%s21 + $0x78] sm:$0xff]
    %v1800 = vld [vmem:[%s22] sm:$0x1]
    %v1802 = vlaneseq
    %v1803 = vshrl.u32 %v1802, 7
    %v1804 = vsub.s32 0, %v1803
    %v1805 = vrot.slane %v1800, %v1804
    %1807 = vmatprep.subr.mxu0 0.0
    %1808 = vmatpush1.msra.mxu0 %v1799
    %1809 = vmatprep.subr.mxu0 0.0
    %1810 = vmatpush1.msra.mxu0 %v1798
    %1811 = vmatprep.subr.mxu0 0.0
    %1812 = vmatpush1.msra.mxu0 %v1797
    %1813 = vmatprep.subr.mxu0 0.0
    %1814 = vmatpush1.msra.mxu0 %v1796
    %1815 = vmatprep.subr.mxu0 0.0
    %1816 = vmatpush1.msra.mxu0 %v1795
    %1817 = vmatprep.subr.mxu0 0.0
    %1818 = vmatpush1.msra.mxu0 %v1794
    %1819 = vmatprep.subr.mxu0 0.0
    %1820 = vmatpush1.msra.mxu0 %v1793
    %1821 = vmatprep.subr.mxu0 0.0
    %1822 = vmatpush1.msra.mxu0 %v1792
    %1823 = vmatprep.subr.mxu0 0.0
    %1824 = vmatpush1.msra.mxu0 %v1791
    %1825 = vmatprep.subr.mxu0 0.0
    %1826 = vmatpush1.msra.mxu0 %v1790
    %1827 = vmatprep.subr.mxu0 0.0
    %1828 = vmatpush1.msra.mxu0 %v1789
    %1829 = vmatprep.subr.mxu0 0.0
    %1830 = vmatpush1.msra.mxu0 %v1788
    %1831 = vmatprep.subr.mxu0 0.0
    %1832 = vmatpush1.msra.mxu0 %v1787
    %1833 = vmatprep.subr.mxu0 0.0
    %1834 = vmatpush1.msra.mxu0 %v1786
    %1835 = vmatprep.subr.mxu0 0.0
    %1836 = vmatpush1.msra.mxu0 %v1785
    %1837 = vmatprep.subr.mxu0 0.0
    %1838 = vmatpush1.msra.mxu0 %v1784
    %1839 = vmatprep.subr.mxu0 0.0
    %1840 = vmatpush2.msra.mxu0 0.0
    %1841 = vmatprep.subr.mxu0 0.0
    %1842 = vmatpush2.msra.mxu0 0.0
    %1843 = vmatprep.subr.mxu0 0.0
    %1844 = vmatpush2.msra.mxu0 0.0
    %1845 = vmatprep.subr.mxu0 0.0
    %1846 = vmatpush2.msra.mxu0 0.0
    %1847 = vmatprep.subr.mxu0 0.0
    %1848 = vmatpush2.msra.mxu0 0.0
    %1849 = vmatprep.subr.mxu0 0.0
    %1850 = vmatpush2.msra.mxu0 0.0
    %1851 = vmatprep.subr.mxu0 0.0
    %1852 = vmatpush2.msra.mxu0 0.0
    %1853 = vmatprep.subr.mxu0 0.0
    %1854 = vmatpush2.msra.mxu0 0.0
    %1855 = vmatprep.subr.mxu0 0.0
    %1856 = vmatpush2.msra.mxu0 0.0
    %1857 = vmatprep.subr.mxu0 0.0
    %1858 = vmatpush2.msra.mxu0 0.0
    %1859 = vmatprep.subr.mxu0 0.0
    %1860 = vmatpush2.msra.mxu0 0.0
    %1861 = vmatprep.subr.mxu0 0.0
    %1862 = vmatpush2.msra.mxu0 0.0
    %1863 = vmatprep.subr.mxu0 0.0
    %1864 = vmatpush2.msra.mxu0 0.0
    %1865 = vmatprep.subr.mxu0 0.0
    %1866 = vmatpush2.msra.mxu0 0.0
    %1867 = vmatprep.subr.mxu0 0.0
    %1868 = vmatpush2.msra.mxu0 0.0
    %1869 = vmatprep.subr.mxu0 0.0
    %1870 = vmatpush2.msra.mxu0 0.0
    %1871 = vmatprep.mubr.f32.mxu0 0.0
    %1872 = vmatmul.mubr.f32.gmra.mxu0 %v1783
    %v1873 = vpop.f32.mrf.mxu0
    %v1874 = vadd.f32 %v1805, %v1873
    %v1875 = vpop.f32.mrf.mxu0
    %1876 = vdwg.mxu0
    %1877 = vst [vmem:[#allocation3] sm:$0x3] %v1874
    // Predicated region
    $region94: #{drgnet_forward_pallas.1} parent=1 // pred_check
      _
    $region95: #{drgnet_forward_pallas.1} parent=1 // pred_check_branch
      %1879 = sbr.rel (0) target = $region97
    $region96: #{drgnet_forward_pallas.1} parent=1 // pred_region
      %s1881 = ssub.s32 32, 32
      %1882 = vsyncadd [#allocation4], %s1881
      %s1884 = sshll.u32 [#allocation3], 4
      %s1885 = int_to_ptr.vmem [resolvable:$true] %s1884
      %1887 = dma.vmem_to_hbm [thread:$0]  %s1885, 32, %s23, [#allocation4]
    $region97: #{drgnet_forward_pallas.1} parent=1 // pred_fallthru
      _
    // Predicated region
    $region98: #{drgnet_forward_pallas.1} parent=1 // pred_check
      _
    $region99: #{drgnet_forward_pallas.1} parent=1 // pred_check_branch
      %1889 = sbr.rel (0) target = $region101
    $region100: #{drgnet_forward_pallas.1} parent=1 // pred_region
      %1890 = dma.done [#allocation4], 32
    $region101: #{drgnet_forward_pallas.1} parent=1 // pred_fallthru
      _
    %1891 = vsyncpa [#allocation4], 1

</llo_original>
